<compile_context>
chip_gen: v5e
topology: v5e:2x2
jax: 0.10.0
libtpu: 0.0.40
codegen_flags: <defaults>
</compile_context>

<pallas_src>
import functools

import jax
import jax.numpy as jnp
from jax.experimental import pallas as pl
from jax.experimental.pallas import tpu as pltpu

HIDDEN = 64
LANES = 128


def _round_up(a, m):
    return ((a + m - 1) // m) * m


def mlp_kernel(x_ref, p_ref, o_ref, *, chunk_rows):
    """x_ref/o_ref: (r_blk, 128) VMEM blocks (batch sublane+lane dense).
    p_ref: (4, 64) SMEM param table: row0=w1, row1=b1, row2=w2, row3=b2."""
    r_blk = x_ref.shape[0]
    cr = min(chunk_rows, r_blk)

    def do_chunk(r0, rows_here):
        x = x_ref[pl.ds(r0, rows_here), :]            # (rows_here, 128) f32
        acc = jnp.zeros_like(x)
        # Feature loop fully unrolled (static 64): per feature a VPU
        # broadcast-FMA + ReLU + weighted accumulate. Weights are SMEM scalars.
        for f in range(HIDDEN):
            h = jnp.maximum(x * p_ref[0, f] + p_ref[1, f], 0.0)   # fc1 + ReLU
            acc = acc + h * p_ref[2, f]                            # fc2 partial
        y = jnp.maximum(acc + p_ref[3, 0], 0.0)                    # + b2, ReLU
        o_ref[pl.ds(r0, rows_here), :] = y.astype(o_ref.dtype)

    n_full, rem = divmod(r_blk, cr)
    if n_full == 1 and rem == 0:
        do_chunk(0, cr)                     # whole block in one register-resident chunk
    else:
        if n_full > 0:
            @pl.loop(0, n_full)
            def _(c):
                start = c * cr
                if cr % 8 == 0:
                    start = pl.multiple_of(start, 8)   # aligned sublane slices
                do_chunk(start, cr)
        if rem > 0:
            do_chunk(n_full * cr, rem)


def net_forward(x, w1, b1, w2, b2, *, block_rows=1024, chunk_rows=64):
    """x: (B, 1); w1: (64, 1); b1: (64,); w2: (1, 64); b2: (1,). Returns (B, 1)."""
    B = x.shape[0]

    # One tiny SMEM-resident param table: (4, 64) = [w1; b1; w2; b2].
    params = jnp.stack(
        [
            w1.reshape(HIDDEN).astype(jnp.float32),
            b1.reshape(HIDDEN).astype(jnp.float32),
            w2.reshape(HIDDEN).astype(jnp.float32),
            jnp.broadcast_to(b2.reshape(()).astype(jnp.float32), (HIDDEN,)),
        ],
        axis=0,
    )

    # Sublane+lane dense batch layout: (rows, 128). Pad only to the next 128.
    b_pad = _round_up(B, LANES)
    x_flat = x.reshape(B).astype(jnp.float32)
    if b_pad != B:
        x_flat = jnp.pad(x_flat, (0, b_pad - B))
    rows = b_pad // LANES
    x2d = x_flat.reshape(rows, LANES)

    # Block-row selection: big blocks, but keep >=2 blocks (v7x megacore) and
    # rely on Pallas partial-last-block handling instead of padding to blocks.
    if rows <= 16:
        r_blk = rows                                   # single full-array block
    else:
        half = _round_up(pl.cdiv(rows, 2), 8)
        r_blk = min(_round_up(block_rows, 8), half)    # multiple of 8
    grid = (pl.cdiv(rows, r_blk),)

    kernel = functools.partial(mlp_kernel, chunk_rows=chunk_rows)

    out2d = pl.pallas_call(
        kernel,
        out_shape=jax.ShapeDtypeStruct((rows, LANES), jnp.float32),
        grid=grid,
        in_specs=[
            pl.BlockSpec((r_blk, LANES), lambda i: (i, 0)),              # x tile
            pl.BlockSpec(memory_space=pltpu.MemorySpace.SMEM),           # params
        ],
        out_specs=pl.BlockSpec((r_blk, LANES), lambda i: (i, 0)),        # y tile
        compiler_params=pltpu.CompilerParams(
            dimension_semantics=("parallel",),         # megacore split on v7x
            vmem_limit_bytes=32 * 1024 * 1024,
        ),
    )(x2d, params)

    out = out2d.reshape(b_pad)
    if b_pad != B:
        out = out[:B]
    return out.reshape(B, 1)


def init_params(key):
    """Mirror PyTorch nn.Linear default init: U(-1/sqrt(fan_in), +1/sqrt(fan_in))."""
    k1, k2, k3, k4 = jax.random.split(key, 4)
    bound1 = 1.0 / jnp.sqrt(1.0)   # fc1 fan_in = 1
    bound2 = 1.0 / jnp.sqrt(64.0)  # fc2 fan_in = 64
    w1 = jax.random.uniform(k1, (64, 1), jnp.float32, -bound1, bound1)
    b1 = jax.random.uniform(k2, (64,), jnp.float32, -bound1, bound1)
    w2 = jax.random.uniform(k3, (1, 64), jnp.float32, -bound2, bound2)
    b2 = jax.random.uniform(k4, (1,), jnp.float32, -bound2, bound2)
    return w1, b1, w2, b2


def _reference(x, w1, b1, w2, b2):
    # Pure-VPU reference (no MXU precision ambiguity): same math as the module.
    h = jnp.maximum(x * w1[:, 0][None, :] + b1[None, :], 0.0)           # (B, 64)
    y = jnp.sum(h * w2[0][None, :], axis=1, keepdims=True) + b2         # (B, 1)
    return jnp.maximum(y, 0.0)


if __name__ == "__main__":
    key = jax.random.PRNGKey(0)
    k_params, k1, k2, k3 = jax.random.split(key, 4)
    w1, b1, w2, b2 = init_params(k_params)

    # Case 1: tiny batch (padded to one 128-lane row, single block).
    x_small = jax.random.normal(k1, (8, 1), jnp.float32)
    out_small = net_forward(x_small, w1, b1, w2, b2)
    jax.block_until_ready(out_small)
    assert out_small.shape == (8, 1)
    assert jnp.allclose(out_small, _reference(x_small, w1, b1, w2, b2), atol=1e-5), \
        "small-batch mismatch"

    # Case 2: ragged batch (pad 300 -> 384, rows=3, single full-array block).
    x_mid = jax.random.normal(k2, (300, 1), jnp.float32)
    out_mid = net_forward(x_mid, w1, b1, w2, b2)
    jax.block_until_ready(out_mid)
    assert out_mid.shape == (300, 1)
    assert jnp.allclose(out_mid, _reference(x_mid, w1, b1, w2, b2), atol=1e-5), \
        "ragged-batch mismatch"

    # Case 3: B=5120 (=40*128, no pad/slice), 2-block grid with a partial last
    # block, plus a multi-iteration in-kernel chunk loop (chunk_rows=8).
    x_big = jax.random.normal(k3, (5120, 1), jnp.float32)
    out_big = net_forward(x_big, w1, b1, w2, b2, chunk_rows=8)
    jax.block_until_ready(out_big)
    assert out_big.shape == (5120, 1)
    assert jnp.allclose(out_big, _reference(x_big, w1, b1, w2, b2), atol=1e-5), \
        "multi-block mismatch"

    print("KERNEL_OK")
</pallas_src>

<mosaic_0001>
module attributes {stable_mosaic.version = 11 : i64} {
  func.func @mlp_kernel(%arg0: i32, %arg1: memref<1x128xf32, #tpu.memory_space<vmem>>, %arg2: memref<4x64xf32, #tpu.memory_space<smem>>, %arg3: memref<1x128xf32, #tpu.memory_space<vmem>>) attributes {dimension_semantics = [#tpu.dimension_semantics<parallel>], iteration_bounds = array<i64: 1>, scalar_prefetch = 0 : i64, scratch_operands = 0 : i64, tpu.core_type = #tpu.core_type<tc>, window_params = [{transform_indices = @transform_0, window_bounds = array<i64: 1, 128>}, {transform_indices = @transform_1, window_bounds = array<i64: 4, 64>}, {transform_indices = @transform_2, window_bounds = array<i64: 1, 128>}]} {
    %c0 = arith.constant 0 : index
    %c0_0 = arith.constant 0 : index
    %0 = vector.load %arg1[%c0, %c0_0] : memref<1x128xf32, #tpu.memory_space<vmem>>, vector<1x128xf32>
    %cst = arith.constant 0.000000e+00 : f32
    %1 = vector.broadcast %cst : f32 to vector<1x128xf32>
    %c0_1 = arith.constant 0 : index
    %c0_2 = arith.constant 0 : index
    %2 = memref.load %arg2[%c0_1, %c0_2] : memref<4x64xf32, #tpu.memory_space<smem>>
    %3 = vector.broadcast %2 : f32 to vector<1x128xf32>
    %4 = arith.mulf %0, %3 : vector<1x128xf32>
    %c1 = arith.constant 1 : index
    %c0_3 = arith.constant 0 : index
    %5 = memref.load %arg2[%c1, %c0_3] : memref<4x64xf32, #tpu.memory_space<smem>>
    %6 = vector.broadcast %5 : f32 to vector<1x128xf32>
    %7 = arith.addf %4, %6 : vector<1x128xf32>
    %cst_4 = arith.constant 0.000000e+00 : f32
    %8 = vector.broadcast %cst_4 : f32 to vector<1x128xf32>
    %9 = arith.maximumf %7, %8 : vector<1x128xf32>
    %c2 = arith.constant 2 : index
    %c0_5 = arith.constant 0 : index
    %10 = memref.load %arg2[%c2, %c0_5] : memref<4x64xf32, #tpu.memory_space<smem>>
    %11 = vector.broadcast %10 : f32 to vector<1x128xf32>
    %12 = arith.mulf %9, %11 : vector<1x128xf32>
    %13 = arith.addf %1, %12 : vector<1x128xf32>
    %c0_6 = arith.constant 0 : index
    %c1_7 = arith.constant 1 : index
    %14 = memref.load %arg2[%c0_6, %c1_7] : memref<4x64xf32, #tpu.memory_space<smem>>
    %15 = vector.broadcast %14 : f32 to vector<1x128xf32>
    %16 = arith.mulf %0, %15 : vector<1x128xf32>
    %c1_8 = arith.constant 1 : index
    %c1_9 = arith.constant 1 : index
    %17 = memref.load %arg2[%c1_8, %c1_9] : memref<4x64xf32, #tpu.memory_space<smem>>
    %18 = vector.broadcast %17 : f32 to vector<1x128xf32>
    %19 = arith.addf %16, %18 : vector<1x128xf32>
    %cst_10 = arith.constant 0.000000e+00 : f32
    %20 = vector.broadcast %cst_10 : f32 to vector<1x128xf32>
    %21 = arith.maximumf %19, %20 : vector<1x128xf32>
    %c2_11 = arith.constant 2 : index
    %c1_12 = arith.constant 1 : index
    %22 = memref.load %arg2[%c2_11, %c1_12] : memref<4x64xf32, #tpu.memory_space<smem>>
    %23 = vector.broadcast %22 : f32 to vector<1x128xf32>
    %24 = arith.mulf %21, %23 : vector<1x128xf32>
    %25 = arith.addf %13, %24 : vector<1x128xf32>
    %c0_13 = arith.constant 0 : index
    %c2_14 = arith.constant 2 : index
    %26 = memref.load %arg2[%c0_13, %c2_14] : memref<4x64xf32, #tpu.memory_space<smem>>
    %27 = vector.broadcast %26 : f32 to vector<1x128xf32>
    %28 = arith.mulf %0, %27 : vector<1x128xf32>
    %c1_15 = arith.constant 1 : index
    %c2_16 = arith.constant 2 : index
    %29 = memref.load %arg2[%c1_15, %c2_16] : memref<4x64xf32, #tpu.memory_space<smem>>
    %30 = vector.broadcast %29 : f32 to vector<1x128xf32>
    %31 = arith.addf %28, %30 : vector<1x128xf32>
    %cst_17 = arith.constant 0.000000e+00 : f32
    %32 = vector.broadcast %cst_17 : f32 to vector<1x128xf32>
    %33 = arith.maximumf %31, %32 : vector<1x128xf32>
    %c2_18 = arith.constant 2 : index
    %c2_19 = arith.constant 2 : index
    %34 = memref.load %arg2[%c2_18, %c2_19] : memref<4x64xf32, #tpu.memory_space<smem>>
    %35 = vector.broadcast %34 : f32 to vector<1x128xf32>
    %36 = arith.mulf %33, %35 : vector<1x128xf32>
    %37 = arith.addf %25, %36 : vector<1x128xf32>
    %c0_20 = arith.constant 0 : index
    %c3 = arith.constant 3 : index
    %38 = memref.load %arg2[%c0_20, %c3] : memref<4x64xf32, #tpu.memory_space<smem>>
    %39 = vector.broadcast %38 : f32 to vector<1x128xf32>
    %40 = arith.mulf %0, %39 : vector<1x128xf32>
    %c1_21 = arith.constant 1 : index
    %c3_22 = arith.constant 3 : index
    %41 = memref.load %arg2[%c1_21, %c3_22] : memref<4x64xf32, #tpu.memory_space<smem>>
    %42 = vector.broadcast %41 : f32 to vector<1x128xf32>
    %43 = arith.addf %40, %42 : vector<1x128xf32>
    %cst_23 = arith.constant 0.000000e+00 : f32
    %44 = vector.broadcast %cst_23 : f32 to vector<1x128xf32>
    %45 = arith.maximumf %43, %44 : vector<1x128xf32>
    %c2_24 = arith.constant 2 : index
    %c3_25 = arith.constant 3 : index
    %46 = memref.load %arg2[%c2_24, %c3_25] : memref<4x64xf32, #tpu.memory_space<smem>>
    %47 = vector.broadcast %46 : f32 to vector<1x128xf32>
    %48 = arith.mulf %45, %47 : vector<1x128xf32>
    %49 = arith.addf %37, %48 : vector<1x128xf32>
    %c0_26 = arith.constant 0 : index
    %c4 = arith.constant 4 : index
    %50 = memref.load %arg2[%c0_26, %c4] : memref<4x64xf32, #tpu.memory_space<smem>>
    %51 = vector.broadcast %50 : f32 to vector<1x128xf32>
    %52 = arith.mulf %0, %51 : vector<1x128xf32>
    %c1_27 = arith.constant 1 : index
    %c4_28 = arith.constant 4 : index
    %53 = memref.load %arg2[%c1_27, %c4_28] : memref<4x64xf32, #tpu.memory_space<smem>>
    %54 = vector.broadcast %53 : f32 to vector<1x128xf32>
    %55 = arith.addf %52, %54 : vector<1x128xf32>
    %cst_29 = arith.constant 0.000000e+00 : f32
    %56 = vector.broadcast %cst_29 : f32 to vector<1x128xf32>
    %57 = arith.maximumf %55, %56 : vector<1x128xf32>
    %c2_30 = arith.constant 2 : index
    %c4_31 = arith.constant 4 : index
    %58 = memref.load %arg2[%c2_30, %c4_31] : memref<4x64xf32, #tpu.memory_space<smem>>
    %59 = vector.broadcast %58 : f32 to vector<1x128xf32>
    %60 = arith.mulf %57, %59 : vector<1x128xf32>
    %61 = arith.addf %49, %60 : vector<1x128xf32>
    %c0_32 = arith.constant 0 : index
    %c5 = arith.constant 5 : index
    %62 = memref.load %arg2[%c0_32, %c5] : memref<4x64xf32, #tpu.memory_space<smem>>
    %63 = vector.broadcast %62 : f32 to vector<1x128xf32>
    %64 = arith.mulf %0, %63 : vector<1x128xf32>
    %c1_33 = arith.constant 1 : index
    %c5_34 = arith.constant 5 : index
    %65 = memref.load %arg2[%c1_33, %c5_34] : memref<4x64xf32, #tpu.memory_space<smem>>
    %66 = vector.broadcast %65 : f32 to vector<1x128xf32>
    %67 = arith.addf %64, %66 : vector<1x128xf32>
    %cst_35 = arith.constant 0.000000e+00 : f32
    %68 = vector.broadcast %cst_35 : f32 to vector<1x128xf32>
    %69 = arith.maximumf %67, %68 : vector<1x128xf32>
    %c2_36 = arith.constant 2 : index
    %c5_37 = arith.constant 5 : index
    %70 = memref.load %arg2[%c2_36, %c5_37] : memref<4x64xf32, #tpu.memory_space<smem>>
    %71 = vector.broadcast %70 : f32 to vector<1x128xf32>
    %72 = arith.mulf %69, %71 : vector<1x128xf32>
    %73 = arith.addf %61, %72 : vector<1x128xf32>
    %c0_38 = arith.constant 0 : index
    %c6 = arith.constant 6 : index
    %74 = memref.load %arg2[%c0_38, %c6] : memref<4x64xf32, #tpu.memory_space<smem>>
    %75 = vector.broadcast %74 : f32 to vector<1x128xf32>
    %76 = arith.mulf %0, %75 : vector<1x128xf32>
    %c1_39 = arith.constant 1 : index
    %c6_40 = arith.constant 6 : index
    %77 = memref.load %arg2[%c1_39, %c6_40] : memref<4x64xf32, #tpu.memory_space<smem>>
    %78 = vector.broadcast %77 : f32 to vector<1x128xf32>
    %79 = arith.addf %76, %78 : vector<1x128xf32>
    %cst_41 = arith.constant 0.000000e+00 : f32
    %80 = vector.broadcast %cst_41 : f32 to vector<1x128xf32>
    %81 = arith.maximumf %79, %80 : vector<1x128xf32>
    %c2_42 = arith.constant 2 : index
    %c6_43 = arith.constant 6 : index
    %82 = memref.load %arg2[%c2_42, %c6_43] : memref<4x64xf32, #tpu.memory_space<smem>>
    %83 = vector.broadcast %82 : f32 to vector<1x128xf32>
    %84 = arith.mulf %81, %83 : vector<1x128xf32>
    %85 = arith.addf %73, %84 : vector<1x128xf32>
    %c0_44 = arith.constant 0 : index
    %c7 = arith.constant 7 : index
    %86 = memref.load %arg2[%c0_44, %c7] : memref<4x64xf32, #tpu.memory_space<smem>>
    %87 = vector.broadcast %86 : f32 to vector<1x128xf32>
    %88 = arith.mulf %0, %87 : vector<1x128xf32>
    %c1_45 = arith.constant 1 : index
    %c7_46 = arith.constant 7 : index
    %89 = memref.load %arg2[%c1_45, %c7_46] : memref<4x64xf32, #tpu.memory_space<smem>>
    %90 = vector.broadcast %89 : f32 to vector<1x128xf32>
    %91 = arith.addf %88, %90 : vector<1x128xf32>
    %cst_47 = arith.constant 0.000000e+00 : f32
    %92 = vector.broadcast %cst_47 : f32 to vector<1x128xf32>
    %93 = arith.maximumf %91, %92 : vector<1x128xf32>
    %c2_48 = arith.constant 2 : index
    %c7_49 = arith.constant 7 : index
    %94 = memref.load %arg2[%c2_48, %c7_49] : memref<4x64xf32, #tpu.memory_space<smem>>
    %95 = vector.broadcast %94 : f32 to vector<1x128xf32>
    %96 = arith.mulf %93, %95 : vector<1x128xf32>
    %97 = arith.addf %85, %96 : vector<1x128xf32>
    %c0_50 = arith.constant 0 : index
    %c8 = arith.constant 8 : index
    %98 = memref.load %arg2[%c0_50, %c8] : memref<4x64xf32, #tpu.memory_space<smem>>
    %99 = vector.broadcast %98 : f32 to vector<1x128xf32>
    %100 = arith.mulf %0, %99 : vector<1x128xf32>
    %c1_51 = arith.constant 1 : index
    %c8_52 = arith.constant 8 : index
    %101 = memref.load %arg2[%c1_51, %c8_52] : memref<4x64xf32, #tpu.memory_space<smem>>
    %102 = vector.broadcast %101 : f32 to vector<1x128xf32>
    %103 = arith.addf %100, %102 : vector<1x128xf32>
    %cst_53 = arith.constant 0.000000e+00 : f32
    %104 = vector.broadcast %cst_53 : f32 to vector<1x128xf32>
    %105 = arith.maximumf %103, %104 : vector<1x128xf32>
    %c2_54 = arith.constant 2 : index
    %c8_55 = arith.constant 8 : index
    %106 = memref.load %arg2[%c2_54, %c8_55] : memref<4x64xf32, #tpu.memory_space<smem>>
    %107 = vector.broadcast %106 : f32 to vector<1x128xf32>
    %108 = arith.mulf %105, %107 : vector<1x128xf32>
    %109 = arith.addf %97, %108 : vector<1x128xf32>
    %c0_56 = arith.constant 0 : index
    %c9 = arith.constant 9 : index
    %110 = memref.load %arg2[%c0_56, %c9] : memref<4x64xf32, #tpu.memory_space<smem>>
    %111 = vector.broadcast %110 : f32 to vector<1x128xf32>
    %112 = arith.mulf %0, %111 : vector<1x128xf32>
    %c1_57 = arith.constant 1 : index
    %c9_58 = arith.constant 9 : index
    %113 = memref.load %arg2[%c1_57, %c9_58] : memref<4x64xf32, #tpu.memory_space<smem>>
    %114 = vector.broadcast %113 : f32 to vector<1x128xf32>
    %115 = arith.addf %112, %114 : vector<1x128xf32>
    %cst_59 = arith.constant 0.000000e+00 : f32
    %116 = vector.broadcast %cst_59 : f32 to vector<1x128xf32>
    %117 = arith.maximumf %115, %116 : vector<1x128xf32>
    %c2_60 = arith.constant 2 : index
    %c9_61 = arith.constant 9 : index
    %118 = memref.load %arg2[%c2_60, %c9_61] : memref<4x64xf32, #tpu.memory_space<smem>>
    %119 = vector.broadcast %118 : f32 to vector<1x128xf32>
    %120 = arith.mulf %117, %119 : vector<1x128xf32>
    %121 = arith.addf %109, %120 : vector<1x128xf32>
    %c0_62 = arith.constant 0 : index
    %c10 = arith.constant 10 : index
    %122 = memref.load %arg2[%c0_62, %c10] : memref<4x64xf32, #tpu.memory_space<smem>>
    %123 = vector.broadcast %122 : f32 to vector<1x128xf32>
    %124 = arith.mulf %0, %123 : vector<1x128xf32>
    %c1_63 = arith.constant 1 : index
    %c10_64 = arith.constant 10 : index
    %125 = memref.load %arg2[%c1_63, %c10_64] : memref<4x64xf32, #tpu.memory_space<smem>>
    %126 = vector.broadcast %125 : f32 to vector<1x128xf32>
    %127 = arith.addf %124, %126 : vector<1x128xf32>
    %cst_65 = arith.constant 0.000000e+00 : f32
    %128 = vector.broadcast %cst_65 : f32 to vector<1x128xf32>
    %129 = arith.maximumf %127, %128 : vector<1x128xf32>
    %c2_66 = arith.constant 2 : index
    %c10_67 = arith.constant 10 : index
    %130 = memref.load %arg2[%c2_66, %c10_67] : memref<4x64xf32, #tpu.memory_space<smem>>
    %131 = vector.broadcast %130 : f32 to vector<1x128xf32>
    %132 = arith.mulf %129, %131 : vector<1x128xf32>
    %133 = arith.addf %121, %132 : vector<1x128xf32>
    %c0_68 = arith.constant 0 : index
    %c11 = arith.constant 11 : index
    %134 = memref.load %arg2[%c0_68, %c11] : memref<4x64xf32, #tpu.memory_space<smem>>
    %135 = vector.broadcast %134 : f32 to vector<1x128xf32>
    %136 = arith.mulf %0, %135 : vector<1x128xf32>
    %c1_69 = arith.constant 1 : index
    %c11_70 = arith.constant 11 : index
    %137 = memref.load %arg2[%c1_69, %c11_70] : memref<4x64xf32, #tpu.memory_space<smem>>
    %138 = vector.broadcast %137 : f32 to vector<1x128xf32>
    %139 = arith.addf %136, %138 : vector<1x128xf32>
    %cst_71 = arith.constant 0.000000e+00 : f32
    %140 = vector.broadcast %cst_71 : f32 to vector<1x128xf32>
    %141 = arith.maximumf %139, %140 : vector<1x128xf32>
    %c2_72 = arith.constant 2 : index
    %c11_73 = arith.constant 11 : index
    %142 = memref.load %arg2[%c2_72, %c11_73] : memref<4x64xf32, #tpu.memory_space<smem>>
    %143 = vector.broadcast %142 : f32 to vector<1x128xf32>
    %144 = arith.mulf %141, %143 : vector<1x128xf32>
    %145 = arith.addf %133, %144 : vector<1x128xf32>
    %c0_74 = arith.constant 0 : index
    %c12 = arith.constant 12 : index
    %146 = memref.load %arg2[%c0_74, %c12] : memref<4x64xf32, #tpu.memory_space<smem>>
    %147 = vector.broadcast %146 : f32 to vector<1x128xf32>
    %148 = arith.mulf %0, %147 : vector<1x128xf32>
    %c1_75 = arith.constant 1 : index
    %c12_76 = arith.constant 12 : index
    %149 = memref.load %arg2[%c1_75, %c12_76] : memref<4x64xf32, #tpu.memory_space<smem>>
    %150 = vector.broadcast %149 : f32 to vector<1x128xf32>
    %151 = arith.addf %148, %150 : vector<1x128xf32>
    %cst_77 = arith.constant 0.000000e+00 : f32
    %152 = vector.broadcast %cst_77 : f32 to vector<1x128xf32>
    %153 = arith.maximumf %151, %152 : vector<1x128xf32>
    %c2_78 = arith.constant 2 : index
    %c12_79 = arith.constant 12 : index
    %154 = memref.load %arg2[%c2_78, %c12_79] : memref<4x64xf32, #tpu.memory_space<smem>>
    %155 = vector.broadcast %154 : f32 to vector<1x128xf32>
    %156 = arith.mulf %153, %155 : vector<1x128xf32>
    %157 = arith.addf %145, %156 : vector<1x128xf32>
    %c0_80 = arith.constant 0 : index
    %c13 = arith.constant 13 : index
    %158 = memref.load %arg2[%c0_80, %c13] : memref<4x64xf32, #tpu.memory_space<smem>>
    %159 = vector.broadcast %158 : f32 to vector<1x128xf32>
    %160 = arith.mulf %0, %159 : vector<1x128xf32>
    %c1_81 = arith.constant 1 : index
    %c13_82 = arith.constant 13 : index
    %161 = memref.load %arg2[%c1_81, %c13_82] : memref<4x64xf32, #tpu.memory_space<smem>>
    %162 = vector.broadcast %161 : f32 to vector<1x128xf32>
    %163 = arith.addf %160, %162 : vector<1x128xf32>
    %cst_83 = arith.constant 0.000000e+00 : f32
    %164 = vector.broadcast %cst_83 : f32 to vector<1x128xf32>
    %165 = arith.maximumf %163, %164 : vector<1x128xf32>
    %c2_84 = arith.constant 2 : index
    %c13_85 = arith.constant 13 : index
    %166 = memref.load %arg2[%c2_84, %c13_85] : memref<4x64xf32, #tpu.memory_space<smem>>
    %167 = vector.broadcast %166 : f32 to vector<1x128xf32>
    %168 = arith.mulf %165, %167 : vector<1x128xf32>
    %169 = arith.addf %157, %168 : vector<1x128xf32>
    %c0_86 = arith.constant 0 : index
    %c14 = arith.constant 14 : index
    %170 = memref.load %arg2[%c0_86, %c14] : memref<4x64xf32, #tpu.memory_space<smem>>
    %171 = vector.broadcast %170 : f32 to vector<1x128xf32>
    %172 = arith.mulf %0, %171 : vector<1x128xf32>
    %c1_87 = arith.constant 1 : index
    %c14_88 = arith.constant 14 : index
    %173 = memref.load %arg2[%c1_87, %c14_88] : memref<4x64xf32, #tpu.memory_space<smem>>
    %174 = vector.broadcast %173 : f32 to vector<1x128xf32>
    %175 = arith.addf %172, %174 : vector<1x128xf32>
    %cst_89 = arith.constant 0.000000e+00 : f32
    %176 = vector.broadcast %cst_89 : f32 to vector<1x128xf32>
    %177 = arith.maximumf %175, %176 : vector<1x128xf32>
    %c2_90 = arith.constant 2 : index
    %c14_91 = arith.constant 14 : index
    %178 = memref.load %arg2[%c2_90, %c14_91] : memref<4x64xf32, #tpu.memory_space<smem>>
    %179 = vector.broadcast %178 : f32 to vector<1x128xf32>
    %180 = arith.mulf %177, %179 : vector<1x128xf32>
    %181 = arith.addf %169, %180 : vector<1x128xf32>
    %c0_92 = arith.constant 0 : index
    %c15 = arith.constant 15 : index
    %182 = memref.load %arg2[%c0_92, %c15] : memref<4x64xf32, #tpu.memory_space<smem>>
    %183 = vector.broadcast %182 : f32 to vector<1x128xf32>
    %184 = arith.mulf %0, %183 : vector<1x128xf32>
    %c1_93 = arith.constant 1 : index
    %c15_94 = arith.constant 15 : index
    %185 = memref.load %arg2[%c1_93, %c15_94] : memref<4x64xf32, #tpu.memory_space<smem>>
    %186 = vector.broadcast %185 : f32 to vector<1x128xf32>
    %187 = arith.addf %184, %186 : vector<1x128xf32>
    %cst_95 = arith.constant 0.000000e+00 : f32
    %188 = vector.broadcast %cst_95 : f32 to vector<1x128xf32>
    %189 = arith.maximumf %187, %188 : vector<1x128xf32>
    %c2_96 = arith.constant 2 : index
    %c15_97 = arith.constant 15 : index
    %190 = memref.load %arg2[%c2_96, %c15_97] : memref<4x64xf32, #tpu.memory_space<smem>>
    %191 = vector.broadcast %190 : f32 to vector<1x128xf32>
    %192 = arith.mulf %189, %191 : vector<1x128xf32>
    %193 = arith.addf %181, %192 : vector<1x128xf32>
    %c0_98 = arith.constant 0 : index
    %c16 = arith.constant 16 : index
    %194 = memref.load %arg2[%c0_98, %c16] : memref<4x64xf32, #tpu.memory_space<smem>>
    %195 = vector.broadcast %194 : f32 to vector<1x128xf32>
    %196 = arith.mulf %0, %195 : vector<1x128xf32>
    %c1_99 = arith.constant 1 : index
    %c16_100 = arith.constant 16 : index
    %197 = memref.load %arg2[%c1_99, %c16_100] : memref<4x64xf32, #tpu.memory_space<smem>>
    %198 = vector.broadcast %197 : f32 to vector<1x128xf32>
    %199 = arith.addf %196, %198 : vector<1x128xf32>
    %cst_101 = arith.constant 0.000000e+00 : f32
    %200 = vector.broadcast %cst_101 : f32 to vector<1x128xf32>
    %201 = arith.maximumf %199, %200 : vector<1x128xf32>
    %c2_102 = arith.constant 2 : index
    %c16_103 = arith.constant 16 : index
    %202 = memref.load %arg2[%c2_102, %c16_103] : memref<4x64xf32, #tpu.memory_space<smem>>
    %203 = vector.broadcast %202 : f32 to vector<1x128xf32>
    %204 = arith.mulf %201, %203 : vector<1x128xf32>
    %205 = arith.addf %193, %204 : vector<1x128xf32>
    %c0_104 = arith.constant 0 : index
    %c17 = arith.constant 17 : index
    %206 = memref.load %arg2[%c0_104, %c17] : memref<4x64xf32, #tpu.memory_space<smem>>
    %207 = vector.broadcast %206 : f32 to vector<1x128xf32>
    %208 = arith.mulf %0, %207 : vector<1x128xf32>
    %c1_105 = arith.constant 1 : index
    %c17_106 = arith.constant 17 : index
    %209 = memref.load %arg2[%c1_105, %c17_106] : memref<4x64xf32, #tpu.memory_space<smem>>
    %210 = vector.broadcast %209 : f32 to vector<1x128xf32>
    %211 = arith.addf %208, %210 : vector<1x128xf32>
    %cst_107 = arith.constant 0.000000e+00 : f32
    %212 = vector.broadcast %cst_107 : f32 to vector<1x128xf32>
    %213 = arith.maximumf %211, %212 : vector<1x128xf32>
    %c2_108 = arith.constant 2 : index
    %c17_109 = arith.constant 17 : index
    %214 = memref.load %arg2[%c2_108, %c17_109] : memref<4x64xf32, #tpu.memory_space<smem>>
    %215 = vector.broadcast %214 : f32 to vector<1x128xf32>
    %216 = arith.mulf %213, %215 : vector<1x128xf32>
    %217 = arith.addf %205, %216 : vector<1x128xf32>
    %c0_110 = arith.constant 0 : index
    %c18 = arith.constant 18 : index
    %218 = memref.load %arg2[%c0_110, %c18] : memref<4x64xf32, #tpu.memory_space<smem>>
    %219 = vector.broadcast %218 : f32 to vector<1x128xf32>
    %220 = arith.mulf %0, %219 : vector<1x128xf32>
    %c1_111 = arith.constant 1 : index
    %c18_112 = arith.constant 18 : index
    %221 = memref.load %arg2[%c1_111, %c18_112] : memref<4x64xf32, #tpu.memory_space<smem>>
    %222 = vector.broadcast %221 : f32 to vector<1x128xf32>
    %223 = arith.addf %220, %222 : vector<1x128xf32>
    %cst_113 = arith.constant 0.000000e+00 : f32
    %224 = vector.broadcast %cst_113 : f32 to vector<1x128xf32>
    %225 = arith.maximumf %223, %224 : vector<1x128xf32>
    %c2_114 = arith.constant 2 : index
    %c18_115 = arith.constant 18 : index
    %226 = memref.load %arg2[%c2_114, %c18_115] : memref<4x64xf32, #tpu.memory_space<smem>>
    %227 = vector.broadcast %226 : f32 to vector<1x128xf32>
    %228 = arith.mulf %225, %227 : vector<1x128xf32>
    %229 = arith.addf %217, %228 : vector<1x128xf32>
    %c0_116 = arith.constant 0 : index
    %c19 = arith.constant 19 : index
    %230 = memref.load %arg2[%c0_116, %c19] : memref<4x64xf32, #tpu.memory_space<smem>>
    %231 = vector.broadcast %230 : f32 to vector<1x128xf32>
    %232 = arith.mulf %0, %231 : vector<1x128xf32>
    %c1_117 = arith.constant 1 : index
    %c19_118 = arith.constant 19 : index
    %233 = memref.load %arg2[%c1_117, %c19_118] : memref<4x64xf32, #tpu.memory_space<smem>>
    %234 = vector.broadcast %233 : f32 to vector<1x128xf32>
    %235 = arith.addf %232, %234 : vector<1x128xf32>
    %cst_119 = arith.constant 0.000000e+00 : f32
    %236 = vector.broadcast %cst_119 : f32 to vector<1x128xf32>
    %237 = arith.maximumf %235, %236 : vector<1x128xf32>
    %c2_120 = arith.constant 2 : index
    %c19_121 = arith.constant 19 : index
    %238 = memref.load %arg2[%c2_120, %c19_121] : memref<4x64xf32, #tpu.memory_space<smem>>
    %239 = vector.broadcast %238 : f32 to vector<1x128xf32>
    %240 = arith.mulf %237, %239 : vector<1x128xf32>
    %241 = arith.addf %229, %240 : vector<1x128xf32>
    %c0_122 = arith.constant 0 : index
    %c20 = arith.constant 20 : index
    %242 = memref.load %arg2[%c0_122, %c20] : memref<4x64xf32, #tpu.memory_space<smem>>
    %243 = vector.broadcast %242 : f32 to vector<1x128xf32>
    %244 = arith.mulf %0, %243 : vector<1x128xf32>
    %c1_123 = arith.constant 1 : index
    %c20_124 = arith.constant 20 : index
    %245 = memref.load %arg2[%c1_123, %c20_124] : memref<4x64xf32, #tpu.memory_space<smem>>
    %246 = vector.broadcast %245 : f32 to vector<1x128xf32>
    %247 = arith.addf %244, %246 : vector<1x128xf32>
    %cst_125 = arith.constant 0.000000e+00 : f32
    %248 = vector.broadcast %cst_125 : f32 to vector<1x128xf32>
    %249 = arith.maximumf %247, %248 : vector<1x128xf32>
    %c2_126 = arith.constant 2 : index
    %c20_127 = arith.constant 20 : index
    %250 = memref.load %arg2[%c2_126, %c20_127] : memref<4x64xf32, #tpu.memory_space<smem>>
    %251 = vector.broadcast %250 : f32 to vector<1x128xf32>
    %252 = arith.mulf %249, %251 : vector<1x128xf32>
    %253 = arith.addf %241, %252 : vector<1x128xf32>
    %c0_128 = arith.constant 0 : index
    %c21 = arith.constant 21 : index
    %254 = memref.load %arg2[%c0_128, %c21] : memref<4x64xf32, #tpu.memory_space<smem>>
    %255 = vector.broadcast %254 : f32 to vector<1x128xf32>
    %256 = arith.mulf %0, %255 : vector<1x128xf32>
    %c1_129 = arith.constant 1 : index
    %c21_130 = arith.constant 21 : index
    %257 = memref.load %arg2[%c1_129, %c21_130] : memref<4x64xf32, #tpu.memory_space<smem>>
    %258 = vector.broadcast %257 : f32 to vector<1x128xf32>
    %259 = arith.addf %256, %258 : vector<1x128xf32>
    %cst_131 = arith.constant 0.000000e+00 : f32
    %260 = vector.broadcast %cst_131 : f32 to vector<1x128xf32>
    %261 = arith.maximumf %259, %260 : vector<1x128xf32>
    %c2_132 = arith.constant 2 : index
    %c21_133 = arith.constant 21 : index
    %262 = memref.load %arg2[%c2_132, %c21_133] : memref<4x64xf32, #tpu.memory_space<smem>>
    %263 = vector.broadcast %262 : f32 to vector<1x128xf32>
    %264 = arith.mulf %261, %263 : vector<1x128xf32>
    %265 = arith.addf %253, %264 : vector<1x128xf32>
    %c0_134 = arith.constant 0 : index
    %c22 = arith.constant 22 : index
    %266 = memref.load %arg2[%c0_134, %c22] : memref<4x64xf32, #tpu.memory_space<smem>>
    %267 = vector.broadcast %266 : f32 to vector<1x128xf32>
    %268 = arith.mulf %0, %267 : vector<1x128xf32>
    %c1_135 = arith.constant 1 : index
    %c22_136 = arith.constant 22 : index
    %269 = memref.load %arg2[%c1_135, %c22_136] : memref<4x64xf32, #tpu.memory_space<smem>>
    %270 = vector.broadcast %269 : f32 to vector<1x128xf32>
    %271 = arith.addf %268, %270 : vector<1x128xf32>
    %cst_137 = arith.constant 0.000000e+00 : f32
    %272 = vector.broadcast %cst_137 : f32 to vector<1x128xf32>
    %273 = arith.maximumf %271, %272 : vector<1x128xf32>
    %c2_138 = arith.constant 2 : index
    %c22_139 = arith.constant 22 : index
    %274 = memref.load %arg2[%c2_138, %c22_139] : memref<4x64xf32, #tpu.memory_space<smem>>
    %275 = vector.broadcast %274 : f32 to vector<1x128xf32>
    %276 = arith.mulf %273, %275 : vector<1x128xf32>
    %277 = arith.addf %265, %276 : vector<1x128xf32>
    %c0_140 = arith.constant 0 : index
    %c23 = arith.constant 23 : index
    %278 = memref.load %arg2[%c0_140, %c23] : memref<4x64xf32, #tpu.memory_space<smem>>
    %279 = vector.broadcast %278 : f32 to vector<1x128xf32>
    %280 = arith.mulf %0, %279 : vector<1x128xf32>
    %c1_141 = arith.constant 1 : index
    %c23_142 = arith.constant 23 : index
    %281 = memref.load %arg2[%c1_141, %c23_142] : memref<4x64xf32, #tpu.memory_space<smem>>
    %282 = vector.broadcast %281 : f32 to vector<1x128xf32>
    %283 = arith.addf %280, %282 : vector<1x128xf32>
    %cst_143 = arith.constant 0.000000e+00 : f32
    %284 = vector.broadcast %cst_143 : f32 to vector<1x128xf32>
    %285 = arith.maximumf %283, %284 : vector<1x128xf32>
    %c2_144 = arith.constant 2 : index
    %c23_145 = arith.constant 23 : index
    %286 = memref.load %arg2[%c2_144, %c23_145] : memref<4x64xf32, #tpu.memory_space<smem>>
    %287 = vector.broadcast %286 : f32 to vector<1x128xf32>
    %288 = arith.mulf %285, %287 : vector<1x128xf32>
    %289 = arith.addf %277, %288 : vector<1x128xf32>
    %c0_146 = arith.constant 0 : index
    %c24 = arith.constant 24 : index
    %290 = memref.load %arg2[%c0_146, %c24] : memref<4x64xf32, #tpu.memory_space<smem>>
    %291 = vector.broadcast %290 : f32 to vector<1x128xf32>
    %292 = arith.mulf %0, %291 : vector<1x128xf32>
    %c1_147 = arith.constant 1 : index
    %c24_148 = arith.constant 24 : index
    %293 = memref.load %arg2[%c1_147, %c24_148] : memref<4x64xf32, #tpu.memory_space<smem>>
    %294 = vector.broadcast %293 : f32 to vector<1x128xf32>
    %295 = arith.addf %292, %294 : vector<1x128xf32>
    %cst_149 = arith.constant 0.000000e+00 : f32
    %296 = vector.broadcast %cst_149 : f32 to vector<1x128xf32>
    %297 = arith.maximumf %295, %296 : vector<1x128xf32>
    %c2_150 = arith.constant 2 : index
    %c24_151 = arith.constant 24 : index
    %298 = memref.load %arg2[%c2_150, %c24_151] : memref<4x64xf32, #tpu.memory_space<smem>>
    %299 = vector.broadcast %298 : f32 to vector<1x128xf32>
    %300 = arith.mulf %297, %299 : vector<1x128xf32>
    %301 = arith.addf %289, %300 : vector<1x128xf32>
    %c0_152 = arith.constant 0 : index
    %c25 = arith.constant 25 : index
    %302 = memref.load %arg2[%c0_152, %c25] : memref<4x64xf32, #tpu.memory_space<smem>>
    %303 = vector.broadcast %302 : f32 to vector<1x128xf32>
    %304 = arith.mulf %0, %303 : vector<1x128xf32>
    %c1_153 = arith.constant 1 : index
    %c25_154 = arith.constant 25 : index
    %305 = memref.load %arg2[%c1_153, %c25_154] : memref<4x64xf32, #tpu.memory_space<smem>>
    %306 = vector.broadcast %305 : f32 to vector<1x128xf32>
    %307 = arith.addf %304, %306 : vector<1x128xf32>
    %cst_155 = arith.constant 0.000000e+00 : f32
    %308 = vector.broadcast %cst_155 : f32 to vector<1x128xf32>
    %309 = arith.maximumf %307, %308 : vector<1x128xf32>
    %c2_156 = arith.constant 2 : index
    %c25_157 = arith.constant 25 : index
    %310 = memref.load %arg2[%c2_156, %c25_157] : memref<4x64xf32, #tpu.memory_space<smem>>
    %311 = vector.broadcast %310 : f32 to vector<1x128xf32>
    %312 = arith.mulf %309, %311 : vector<1x128xf32>
    %313 = arith.addf %301, %312 : vector<1x128xf32>
    %c0_158 = arith.constant 0 : index
    %c26 = arith.constant 26 : index
    %314 = memref.load %arg2[%c0_158, %c26] : memref<4x64xf32, #tpu.memory_space<smem>>
    %315 = vector.broadcast %314 : f32 to vector<1x128xf32>
    %316 = arith.mulf %0, %315 : vector<1x128xf32>
    %c1_159 = arith.constant 1 : index
    %c26_160 = arith.constant 26 : index
    %317 = memref.load %arg2[%c1_159, %c26_160] : memref<4x64xf32, #tpu.memory_space<smem>>
    %318 = vector.broadcast %317 : f32 to vector<1x128xf32>
    %319 = arith.addf %316, %318 : vector<1x128xf32>
    %cst_161 = arith.constant 0.000000e+00 : f32
    %320 = vector.broadcast %cst_161 : f32 to vector<1x128xf32>
    %321 = arith.maximumf %319, %320 : vector<1x128xf32>
    %c2_162 = arith.constant 2 : index
    %c26_163 = arith.constant 26 : index
    %322 = memref.load %arg2[%c2_162, %c26_163] : memref<4x64xf32, #tpu.memory_space<smem>>
    %323 = vector.broadcast %322 : f32 to vector<1x128xf32>
    %324 = arith.mulf %321, %323 : vector<1x128xf32>
    %325 = arith.addf %313, %324 : vector<1x128xf32>
    %c0_164 = arith.constant 0 : index
    %c27 = arith.constant 27 : index
    %326 = memref.load %arg2[%c0_164, %c27] : memref<4x64xf32, #tpu.memory_space<smem>>
    %327 = vector.broadcast %326 : f32 to vector<1x128xf32>
    %328 = arith.mulf %0, %327 : vector<1x128xf32>
    %c1_165 = arith.constant 1 : index
    %c27_166 = arith.constant 27 : index
    %329 = memref.load %arg2[%c1_165, %c27_166] : memref<4x64xf32, #tpu.memory_space<smem>>
    %330 = vector.broadcast %329 : f32 to vector<1x128xf32>
    %331 = arith.addf %328, %330 : vector<1x128xf32>
    %cst_167 = arith.constant 0.000000e+00 : f32
    %332 = vector.broadcast %cst_167 : f32 to vector<1x128xf32>
    %333 = arith.maximumf %331, %332 : vector<1x128xf32>
    %c2_168 = arith.constant 2 : index
    %c27_169 = arith.constant 27 : index
    %334 = memref.load %arg2[%c2_168, %c27_169] : memref<4x64xf32, #tpu.memory_space<smem>>
    %335 = vector.broadcast %334 : f32 to vector<1x128xf32>
    %336 = arith.mulf %333, %335 : vector<1x128xf32>
    %337 = arith.addf %325, %336 : vector<1x128xf32>
    %c0_170 = arith.constant 0 : index
    %c28 = arith.constant 28 : index
    %338 = memref.load %arg2[%c0_170, %c28] : memref<4x64xf32, #tpu.memory_space<smem>>
    %339 = vector.broadcast %338 : f32 to vector<1x128xf32>
    %340 = arith.mulf %0, %339 : vector<1x128xf32>
    %c1_171 = arith.constant 1 : index
    %c28_172 = arith.constant 28 : index
    %341 = memref.load %arg2[%c1_171, %c28_172] : memref<4x64xf32, #tpu.memory_space<smem>>
    %342 = vector.broadcast %341 : f32 to vector<1x128xf32>
    %343 = arith.addf %340, %342 : vector<1x128xf32>
    %cst_173 = arith.constant 0.000000e+00 : f32
    %344 = vector.broadcast %cst_173 : f32 to vector<1x128xf32>
    %345 = arith.maximumf %343, %344 : vector<1x128xf32>
    %c2_174 = arith.constant 2 : index
    %c28_175 = arith.constant 28 : index
    %346 = memref.load %arg2[%c2_174, %c28_175] : memref<4x64xf32, #tpu.memory_space<smem>>
    %347 = vector.broadcast %346 : f32 to vector<1x128xf32>
    %348 = arith.mulf %345, %347 : vector<1x128xf32>
    %349 = arith.addf %337, %348 : vector<1x128xf32>
    %c0_176 = arith.constant 0 : index
    %c29 = arith.constant 29 : index
    %350 = memref.load %arg2[%c0_176, %c29] : memref<4x64xf32, #tpu.memory_space<smem>>
    %351 = vector.broadcast %350 : f32 to vector<1x128xf32>
    %352 = arith.mulf %0, %351 : vector<1x128xf32>
    %c1_177 = arith.constant 1 : index
    %c29_178 = arith.constant 29 : index
    %353 = memref.load %arg2[%c1_177, %c29_178] : memref<4x64xf32, #tpu.memory_space<smem>>
    %354 = vector.broadcast %353 : f32 to vector<1x128xf32>
    %355 = arith.addf %352, %354 : vector<1x128xf32>
    %cst_179 = arith.constant 0.000000e+00 : f32
    %356 = vector.broadcast %cst_179 : f32 to vector<1x128xf32>
    %357 = arith.maximumf %355, %356 : vector<1x128xf32>
    %c2_180 = arith.constant 2 : index
    %c29_181 = arith.constant 29 : index
    %358 = memref.load %arg2[%c2_180, %c29_181] : memref<4x64xf32, #tpu.memory_space<smem>>
    %359 = vector.broadcast %358 : f32 to vector<1x128xf32>
    %360 = arith.mulf %357, %359 : vector<1x128xf32>
    %361 = arith.addf %349, %360 : vector<1x128xf32>
    %c0_182 = arith.constant 0 : index
    %c30 = arith.constant 30 : index
    %362 = memref.load %arg2[%c0_182, %c30] : memref<4x64xf32, #tpu.memory_space<smem>>
    %363 = vector.broadcast %362 : f32 to vector<1x128xf32>
    %364 = arith.mulf %0, %363 : vector<1x128xf32>
    %c1_183 = arith.constant 1 : index
    %c30_184 = arith.constant 30 : index
    %365 = memref.load %arg2[%c1_183, %c30_184] : memref<4x64xf32, #tpu.memory_space<smem>>
    %366 = vector.broadcast %365 : f32 to vector<1x128xf32>
    %367 = arith.addf %364, %366 : vector<1x128xf32>
    %cst_185 = arith.constant 0.000000e+00 : f32
    %368 = vector.broadcast %cst_185 : f32 to vector<1x128xf32>
    %369 = arith.maximumf %367, %368 : vector<1x128xf32>
    %c2_186 = arith.constant 2 : index
    %c30_187 = arith.constant 30 : index
    %370 = memref.load %arg2[%c2_186, %c30_187] : memref<4x64xf32, #tpu.memory_space<smem>>
    %371 = vector.broadcast %370 : f32 to vector<1x128xf32>
    %372 = arith.mulf %369, %371 : vector<1x128xf32>
    %373 = arith.addf %361, %372 : vector<1x128xf32>
    %c0_188 = arith.constant 0 : index
    %c31 = arith.constant 31 : index
    %374 = memref.load %arg2[%c0_188, %c31] : memref<4x64xf32, #tpu.memory_space<smem>>
    %375 = vector.broadcast %374 : f32 to vector<1x128xf32>
    %376 = arith.mulf %0, %375 : vector<1x128xf32>
    %c1_189 = arith.constant 1 : index
    %c31_190 = arith.constant 31 : index
    %377 = memref.load %arg2[%c1_189, %c31_190] : memref<4x64xf32, #tpu.memory_space<smem>>
    %378 = vector.broadcast %377 : f32 to vector<1x128xf32>
    %379 = arith.addf %376, %378 : vector<1x128xf32>
    %cst_191 = arith.constant 0.000000e+00 : f32
    %380 = vector.broadcast %cst_191 : f32 to vector<1x128xf32>
    %381 = arith.maximumf %379, %380 : vector<1x128xf32>
    %c2_192 = arith.constant 2 : index
    %c31_193 = arith.constant 31 : index
    %382 = memref.load %arg2[%c2_192, %c31_193] : memref<4x64xf32, #tpu.memory_space<smem>>
    %383 = vector.broadcast %382 : f32 to vector<1x128xf32>
    %384 = arith.mulf %381, %383 : vector<1x128xf32>
    %385 = arith.addf %373, %384 : vector<1x128xf32>
    %c0_194 = arith.constant 0 : index
    %c32 = arith.constant 32 : index
    %386 = memref.load %arg2[%c0_194, %c32] : memref<4x64xf32, #tpu.memory_space<smem>>
    %387 = vector.broadcast %386 : f32 to vector<1x128xf32>
    %388 = arith.mulf %0, %387 : vector<1x128xf32>
    %c1_195 = arith.constant 1 : index
    %c32_196 = arith.constant 32 : index
    %389 = memref.load %arg2[%c1_195, %c32_196] : memref<4x64xf32, #tpu.memory_space<smem>>
    %390 = vector.broadcast %389 : f32 to vector<1x128xf32>
    %391 = arith.addf %388, %390 : vector<1x128xf32>
    %cst_197 = arith.constant 0.000000e+00 : f32
    %392 = vector.broadcast %cst_197 : f32 to vector<1x128xf32>
    %393 = arith.maximumf %391, %392 : vector<1x128xf32>
    %c2_198 = arith.constant 2 : index
    %c32_199 = arith.constant 32 : index
    %394 = memref.load %arg2[%c2_198, %c32_199] : memref<4x64xf32, #tpu.memory_space<smem>>
    %395 = vector.broadcast %394 : f32 to vector<1x128xf32>
    %396 = arith.mulf %393, %395 : vector<1x128xf32>
    %397 = arith.addf %385, %396 : vector<1x128xf32>
    %c0_200 = arith.constant 0 : index
    %c33 = arith.constant 33 : index
    %398 = memref.load %arg2[%c0_200, %c33] : memref<4x64xf32, #tpu.memory_space<smem>>
    %399 = vector.broadcast %398 : f32 to vector<1x128xf32>
    %400 = arith.mulf %0, %399 : vector<1x128xf32>
    %c1_201 = arith.constant 1 : index
    %c33_202 = arith.constant 33 : index
    %401 = memref.load %arg2[%c1_201, %c33_202] : memref<4x64xf32, #tpu.memory_space<smem>>
    %402 = vector.broadcast %401 : f32 to vector<1x128xf32>
    %403 = arith.addf %400, %402 : vector<1x128xf32>
    %cst_203 = arith.constant 0.000000e+00 : f32
    %404 = vector.broadcast %cst_203 : f32 to vector<1x128xf32>
    %405 = arith.maximumf %403, %404 : vector<1x128xf32>
    %c2_204 = arith.constant 2 : index
    %c33_205 = arith.constant 33 : index
    %406 = memref.load %arg2[%c2_204, %c33_205] : memref<4x64xf32, #tpu.memory_space<smem>>
    %407 = vector.broadcast %406 : f32 to vector<1x128xf32>
    %408 = arith.mulf %405, %407 : vector<1x128xf32>
    %409 = arith.addf %397, %408 : vector<1x128xf32>
    %c0_206 = arith.constant 0 : index
    %c34 = arith.constant 34 : index
    %410 = memref.load %arg2[%c0_206, %c34] : memref<4x64xf32, #tpu.memory_space<smem>>
    %411 = vector.broadcast %410 : f32 to vector<1x128xf32>
    %412 = arith.mulf %0, %411 : vector<1x128xf32>
    %c1_207 = arith.constant 1 : index
    %c34_208 = arith.constant 34 : index
    %413 = memref.load %arg2[%c1_207, %c34_208] : memref<4x64xf32, #tpu.memory_space<smem>>
    %414 = vector.broadcast %413 : f32 to vector<1x128xf32>
    %415 = arith.addf %412, %414 : vector<1x128xf32>
    %cst_209 = arith.constant 0.000000e+00 : f32
    %416 = vector.broadcast %cst_209 : f32 to vector<1x128xf32>
    %417 = arith.maximumf %415, %416 : vector<1x128xf32>
    %c2_210 = arith.constant 2 : index
    %c34_211 = arith.constant 34 : index
    %418 = memref.load %arg2[%c2_210, %c34_211] : memref<4x64xf32, #tpu.memory_space<smem>>
    %419 = vector.broadcast %418 : f32 to vector<1x128xf32>
    %420 = arith.mulf %417, %419 : vector<1x128xf32>
    %421 = arith.addf %409, %420 : vector<1x128xf32>
    %c0_212 = arith.constant 0 : index
    %c35 = arith.constant 35 : index
    %422 = memref.load %arg2[%c0_212, %c35] : memref<4x64xf32, #tpu.memory_space<smem>>
    %423 = vector.broadcast %422 : f32 to vector<1x128xf32>
    %424 = arith.mulf %0, %423 : vector<1x128xf32>
    %c1_213 = arith.constant 1 : index
    %c35_214 = arith.constant 35 : index
    %425 = memref.load %arg2[%c1_213, %c35_214] : memref<4x64xf32, #tpu.memory_space<smem>>
    %426 = vector.broadcast %425 : f32 to vector<1x128xf32>
    %427 = arith.addf %424, %426 : vector<1x128xf32>
    %cst_215 = arith.constant 0.000000e+00 : f32
    %428 = vector.broadcast %cst_215 : f32 to vector<1x128xf32>
    %429 = arith.maximumf %427, %428 : vector<1x128xf32>
    %c2_216 = arith.constant 2 : index
    %c35_217 = arith.constant 35 : index
    %430 = memref.load %arg2[%c2_216, %c35_217] : memref<4x64xf32, #tpu.memory_space<smem>>
    %431 = vector.broadcast %430 : f32 to vector<1x128xf32>
    %432 = arith.mulf %429, %431 : vector<1x128xf32>
    %433 = arith.addf %421, %432 : vector<1x128xf32>
    %c0_218 = arith.constant 0 : index
    %c36 = arith.constant 36 : index
    %434 = memref.load %arg2[%c0_218, %c36] : memref<4x64xf32, #tpu.memory_space<smem>>
    %435 = vector.broadcast %434 : f32 to vector<1x128xf32>
    %436 = arith.mulf %0, %435 : vector<1x128xf32>
    %c1_219 = arith.constant 1 : index
    %c36_220 = arith.constant 36 : index
    %437 = memref.load %arg2[%c1_219, %c36_220] : memref<4x64xf32, #tpu.memory_space<smem>>
    %438 = vector.broadcast %437 : f32 to vector<1x128xf32>
    %439 = arith.addf %436, %438 : vector<1x128xf32>
    %cst_221 = arith.constant 0.000000e+00 : f32
    %440 = vector.broadcast %cst_221 : f32 to vector<1x128xf32>
    %441 = arith.maximumf %439, %440 : vector<1x128xf32>
    %c2_222 = arith.constant 2 : index
    %c36_223 = arith.constant 36 : index
    %442 = memref.load %arg2[%c2_222, %c36_223] : memref<4x64xf32, #tpu.memory_space<smem>>
    %443 = vector.broadcast %442 : f32 to vector<1x128xf32>
    %444 = arith.mulf %441, %443 : vector<1x128xf32>
    %445 = arith.addf %433, %444 : vector<1x128xf32>
    %c0_224 = arith.constant 0 : index
    %c37 = arith.constant 37 : index
    %446 = memref.load %arg2[%c0_224, %c37] : memref<4x64xf32, #tpu.memory_space<smem>>
    %447 = vector.broadcast %446 : f32 to vector<1x128xf32>
    %448 = arith.mulf %0, %447 : vector<1x128xf32>
    %c1_225 = arith.constant 1 : index
    %c37_226 = arith.constant 37 : index
    %449 = memref.load %arg2[%c1_225, %c37_226] : memref<4x64xf32, #tpu.memory_space<smem>>
    %450 = vector.broadcast %449 : f32 to vector<1x128xf32>
    %451 = arith.addf %448, %450 : vector<1x128xf32>
    %cst_227 = arith.constant 0.000000e+00 : f32
    %452 = vector.broadcast %cst_227 : f32 to vector<1x128xf32>
    %453 = arith.maximumf %451, %452 : vector<1x128xf32>
    %c2_228 = arith.constant 2 : index
    %c37_229 = arith.constant 37 : index
    %454 = memref.load %arg2[%c2_228, %c37_229] : memref<4x64xf32, #tpu.memory_space<smem>>
    %455 = vector.broadcast %454 : f32 to vector<1x128xf32>
    %456 = arith.mulf %453, %455 : vector<1x128xf32>
    %457 = arith.addf %445, %456 : vector<1x128xf32>
    %c0_230 = arith.constant 0 : index
    %c38 = arith.constant 38 : index
    %458 = memref.load %arg2[%c0_230, %c38] : memref<4x64xf32, #tpu.memory_space<smem>>
    %459 = vector.broadcast %458 : f32 to vector<1x128xf32>
    %460 = arith.mulf %0, %459 : vector<1x128xf32>
    %c1_231 = arith.constant 1 : index
    %c38_232 = arith.constant 38 : index
    %461 = memref.load %arg2[%c1_231, %c38_232] : memref<4x64xf32, #tpu.memory_space<smem>>
    %462 = vector.broadcast %461 : f32 to vector<1x128xf32>
    %463 = arith.addf %460, %462 : vector<1x128xf32>
    %cst_233 = arith.constant 0.000000e+00 : f32
    %464 = vector.broadcast %cst_233 : f32 to vector<1x128xf32>
    %465 = arith.maximumf %463, %464 : vector<1x128xf32>
    %c2_234 = arith.constant 2 : index
    %c38_235 = arith.constant 38 : index
    %466 = memref.load %arg2[%c2_234, %c38_235] : memref<4x64xf32, #tpu.memory_space<smem>>
    %467 = vector.broadcast %466 : f32 to vector<1x128xf32>
    %468 = arith.mulf %465, %467 : vector<1x128xf32>
    %469 = arith.addf %457, %468 : vector<1x128xf32>
    %c0_236 = arith.constant 0 : index
    %c39 = arith.constant 39 : index
    %470 = memref.load %arg2[%c0_236, %c39] : memref<4x64xf32, #tpu.memory_space<smem>>
    %471 = vector.broadcast %470 : f32 to vector<1x128xf32>
    %472 = arith.mulf %0, %471 : vector<1x128xf32>
    %c1_237 = arith.constant 1 : index
    %c39_238 = arith.constant 39 : index
    %473 = memref.load %arg2[%c1_237, %c39_238] : memref<4x64xf32, #tpu.memory_space<smem>>
    %474 = vector.broadcast %473 : f32 to vector<1x128xf32>
    %475 = arith.addf %472, %474 : vector<1x128xf32>
    %cst_239 = arith.constant 0.000000e+00 : f32
    %476 = vector.broadcast %cst_239 : f32 to vector<1x128xf32>
    %477 = arith.maximumf %475, %476 : vector<1x128xf32>
    %c2_240 = arith.constant 2 : index
    %c39_241 = arith.constant 39 : index
    %478 = memref.load %arg2[%c2_240, %c39_241] : memref<4x64xf32, #tpu.memory_space<smem>>
    %479 = vector.broadcast %478 : f32 to vector<1x128xf32>
    %480 = arith.mulf %477, %479 : vector<1x128xf32>
    %481 = arith.addf %469, %480 : vector<1x128xf32>
    %c0_242 = arith.constant 0 : index
    %c40 = arith.constant 40 : index
    %482 = memref.load %arg2[%c0_242, %c40] : memref<4x64xf32, #tpu.memory_space<smem>>
    %483 = vector.broadcast %482 : f32 to vector<1x128xf32>
    %484 = arith.mulf %0, %483 : vector<1x128xf32>
    %c1_243 = arith.constant 1 : index
    %c40_244 = arith.constant 40 : index
    %485 = memref.load %arg2[%c1_243, %c40_244] : memref<4x64xf32, #tpu.memory_space<smem>>
    %486 = vector.broadcast %485 : f32 to vector<1x128xf32>
    %487 = arith.addf %484, %486 : vector<1x128xf32>
    %cst_245 = arith.constant 0.000000e+00 : f32
    %488 = vector.broadcast %cst_245 : f32 to vector<1x128xf32>
    %489 = arith.maximumf %487, %488 : vector<1x128xf32>
    %c2_246 = arith.constant 2 : index
    %c40_247 = arith.constant 40 : index
    %490 = memref.load %arg2[%c2_246, %c40_247] : memref<4x64xf32, #tpu.memory_space<smem>>
    %491 = vector.broadcast %490 : f32 to vector<1x128xf32>
    %492 = arith.mulf %489, %491 : vector<1x128xf32>
    %493 = arith.addf %481, %492 : vector<1x128xf32>
    %c0_248 = arith.constant 0 : index
    %c41 = arith.constant 41 : index
    %494 = memref.load %arg2[%c0_248, %c41] : memref<4x64xf32, #tpu.memory_space<smem>>
    %495 = vector.broadcast %494 : f32 to vector<1x128xf32>
    %496 = arith.mulf %0, %495 : vector<1x128xf32>
    %c1_249 = arith.constant 1 : index
    %c41_250 = arith.constant 41 : index
    %497 = memref.load %arg2[%c1_249, %c41_250] : memref<4x64xf32, #tpu.memory_space<smem>>
    %498 = vector.broadcast %497 : f32 to vector<1x128xf32>
    %499 = arith.addf %496, %498 : vector<1x128xf32>
    %cst_251 = arith.constant 0.000000e+00 : f32
    %500 = vector.broadcast %cst_251 : f32 to vector<1x128xf32>
    %501 = arith.maximumf %499, %500 : vector<1x128xf32>
    %c2_252 = arith.constant 2 : index
    %c41_253 = arith.constant 41 : index
    %502 = memref.load %arg2[%c2_252, %c41_253] : memref<4x64xf32, #tpu.memory_space<smem>>
    %503 = vector.broadcast %502 : f32 to vector<1x128xf32>
    %504 = arith.mulf %501, %503 : vector<1x128xf32>
    %505 = arith.addf %493, %504 : vector<1x128xf32>
    %c0_254 = arith.constant 0 : index
    %c42 = arith.constant 42 : index
    %506 = memref.load %arg2[%c0_254, %c42] : memref<4x64xf32, #tpu.memory_space<smem>>
    %507 = vector.broadcast %506 : f32 to vector<1x128xf32>
    %508 = arith.mulf %0, %507 : vector<1x128xf32>
    %c1_255 = arith.constant 1 : index
    %c42_256 = arith.constant 42 : index
    %509 = memref.load %arg2[%c1_255, %c42_256] : memref<4x64xf32, #tpu.memory_space<smem>>
    %510 = vector.broadcast %509 : f32 to vector<1x128xf32>
    %511 = arith.addf %508, %510 : vector<1x128xf32>
    %cst_257 = arith.constant 0.000000e+00 : f32
    %512 = vector.broadcast %cst_257 : f32 to vector<1x128xf32>
    %513 = arith.maximumf %511, %512 : vector<1x128xf32>
    %c2_258 = arith.constant 2 : index
    %c42_259 = arith.constant 42 : index
    %514 = memref.load %arg2[%c2_258, %c42_259] : memref<4x64xf32, #tpu.memory_space<smem>>
    %515 = vector.broadcast %514 : f32 to vector<1x128xf32>
    %516 = arith.mulf %513, %515 : vector<1x128xf32>
    %517 = arith.addf %505, %516 : vector<1x128xf32>
    %c0_260 = arith.constant 0 : index
    %c43 = arith.constant 43 : index
    %518 = memref.load %arg2[%c0_260, %c43] : memref<4x64xf32, #tpu.memory_space<smem>>
    %519 = vector.broadcast %518 : f32 to vector<1x128xf32>
    %520 = arith.mulf %0, %519 : vector<1x128xf32>
    %c1_261 = arith.constant 1 : index
    %c43_262 = arith.constant 43 : index
    %521 = memref.load %arg2[%c1_261, %c43_262] : memref<4x64xf32, #tpu.memory_space<smem>>
    %522 = vector.broadcast %521 : f32 to vector<1x128xf32>
    %523 = arith.addf %520, %522 : vector<1x128xf32>
    %cst_263 = arith.constant 0.000000e+00 : f32
    %524 = vector.broadcast %cst_263 : f32 to vector<1x128xf32>
    %525 = arith.maximumf %523, %524 : vector<1x128xf32>
    %c2_264 = arith.constant 2 : index
    %c43_265 = arith.constant 43 : index
    %526 = memref.load %arg2[%c2_264, %c43_265] : memref<4x64xf32, #tpu.memory_space<smem>>
    %527 = vector.broadcast %526 : f32 to vector<1x128xf32>
    %528 = arith.mulf %525, %527 : vector<1x128xf32>
    %529 = arith.addf %517, %528 : vector<1x128xf32>
    %c0_266 = arith.constant 0 : index
    %c44 = arith.constant 44 : index
    %530 = memref.load %arg2[%c0_266, %c44] : memref<4x64xf32, #tpu.memory_space<smem>>
    %531 = vector.broadcast %530 : f32 to vector<1x128xf32>
    %532 = arith.mulf %0, %531 : vector<1x128xf32>
    %c1_267 = arith.constant 1 : index
    %c44_268 = arith.constant 44 : index
    %533 = memref.load %arg2[%c1_267, %c44_268] : memref<4x64xf32, #tpu.memory_space<smem>>
    %534 = vector.broadcast %533 : f32 to vector<1x128xf32>
    %535 = arith.addf %532, %534 : vector<1x128xf32>
    %cst_269 = arith.constant 0.000000e+00 : f32
    %536 = vector.broadcast %cst_269 : f32 to vector<1x128xf32>
    %537 = arith.maximumf %535, %536 : vector<1x128xf32>
    %c2_270 = arith.constant 2 : index
    %c44_271 = arith.constant 44 : index
    %538 = memref.load %arg2[%c2_270, %c44_271] : memref<4x64xf32, #tpu.memory_space<smem>>
    %539 = vector.broadcast %538 : f32 to vector<1x128xf32>
    %540 = arith.mulf %537, %539 : vector<1x128xf32>
    %541 = arith.addf %529, %540 : vector<1x128xf32>
    %c0_272 = arith.constant 0 : index
    %c45 = arith.constant 45 : index
    %542 = memref.load %arg2[%c0_272, %c45] : memref<4x64xf32, #tpu.memory_space<smem>>
    %543 = vector.broadcast %542 : f32 to vector<1x128xf32>
    %544 = arith.mulf %0, %543 : vector<1x128xf32>
    %c1_273 = arith.constant 1 : index
    %c45_274 = arith.constant 45 : index
    %545 = memref.load %arg2[%c1_273, %c45_274] : memref<4x64xf32, #tpu.memory_space<smem>>
    %546 = vector.broadcast %545 : f32 to vector<1x128xf32>
    %547 = arith.addf %544, %546 : vector<1x128xf32>
    %cst_275 = arith.constant 0.000000e+00 : f32
    %548 = vector.broadcast %cst_275 : f32 to vector<1x128xf32>
    %549 = arith.maximumf %547, %548 : vector<1x128xf32>
    %c2_276 = arith.constant 2 : index
    %c45_277 = arith.constant 45 : index
    %550 = memref.load %arg2[%c2_276, %c45_277] : memref<4x64xf32, #tpu.memory_space<smem>>
    %551 = vector.broadcast %550 : f32 to vector<1x128xf32>
    %552 = arith.mulf %549, %551 : vector<1x128xf32>
    %553 = arith.addf %541, %552 : vector<1x128xf32>
    %c0_278 = arith.constant 0 : index
    %c46 = arith.constant 46 : index
    %554 = memref.load %arg2[%c0_278, %c46] : memref<4x64xf32, #tpu.memory_space<smem>>
    %555 = vector.broadcast %554 : f32 to vector<1x128xf32>
    %556 = arith.mulf %0, %555 : vector<1x128xf32>
    %c1_279 = arith.constant 1 : index
    %c46_280 = arith.constant 46 : index
    %557 = memref.load %arg2[%c1_279, %c46_280] : memref<4x64xf32, #tpu.memory_space<smem>>
    %558 = vector.broadcast %557 : f32 to vector<1x128xf32>
    %559 = arith.addf %556, %558 : vector<1x128xf32>
    %cst_281 = arith.constant 0.000000e+00 : f32
    %560 = vector.broadcast %cst_281 : f32 to vector<1x128xf32>
    %561 = arith.maximumf %559, %560 : vector<1x128xf32>
    %c2_282 = arith.constant 2 : index
    %c46_283 = arith.constant 46 : index
    %562 = memref.load %arg2[%c2_282, %c46_283] : memref<4x64xf32, #tpu.memory_space<smem>>
    %563 = vector.broadcast %562 : f32 to vector<1x128xf32>
    %564 = arith.mulf %561, %563 : vector<1x128xf32>
    %565 = arith.addf %553, %564 : vector<1x128xf32>
    %c0_284 = arith.constant 0 : index
    %c47 = arith.constant 47 : index
    %566 = memref.load %arg2[%c0_284, %c47] : memref<4x64xf32, #tpu.memory_space<smem>>
    %567 = vector.broadcast %566 : f32 to vector<1x128xf32>
    %568 = arith.mulf %0, %567 : vector<1x128xf32>
    %c1_285 = arith.constant 1 : index
    %c47_286 = arith.constant 47 : index
    %569 = memref.load %arg2[%c1_285, %c47_286] : memref<4x64xf32, #tpu.memory_space<smem>>
    %570 = vector.broadcast %569 : f32 to vector<1x128xf32>
    %571 = arith.addf %568, %570 : vector<1x128xf32>
    %cst_287 = arith.constant 0.000000e+00 : f32
    %572 = vector.broadcast %cst_287 : f32 to vector<1x128xf32>
    %573 = arith.maximumf %571, %572 : vector<1x128xf32>
    %c2_288 = arith.constant 2 : index
    %c47_289 = arith.constant 47 : index
    %574 = memref.load %arg2[%c2_288, %c47_289] : memref<4x64xf32, #tpu.memory_space<smem>>
    %575 = vector.broadcast %574 : f32 to vector<1x128xf32>
    %576 = arith.mulf %573, %575 : vector<1x128xf32>
    %577 = arith.addf %565, %576 : vector<1x128xf32>
    %c0_290 = arith.constant 0 : index
    %c48 = arith.constant 48 : index
    %578 = memref.load %arg2[%c0_290, %c48] : memref<4x64xf32, #tpu.memory_space<smem>>
    %579 = vector.broadcast %578 : f32 to vector<1x128xf32>
    %580 = arith.mulf %0, %579 : vector<1x128xf32>
    %c1_291 = arith.constant 1 : index
    %c48_292 = arith.constant 48 : index
    %581 = memref.load %arg2[%c1_291, %c48_292] : memref<4x64xf32, #tpu.memory_space<smem>>
    %582 = vector.broadcast %581 : f32 to vector<1x128xf32>
    %583 = arith.addf %580, %582 : vector<1x128xf32>
    %cst_293 = arith.constant 0.000000e+00 : f32
    %584 = vector.broadcast %cst_293 : f32 to vector<1x128xf32>
    %585 = arith.maximumf %583, %584 : vector<1x128xf32>
    %c2_294 = arith.constant 2 : index
    %c48_295 = arith.constant 48 : index
    %586 = memref.load %arg2[%c2_294, %c48_295] : memref<4x64xf32, #tpu.memory_space<smem>>
    %587 = vector.broadcast %586 : f32 to vector<1x128xf32>
    %588 = arith.mulf %585, %587 : vector<1x128xf32>
    %589 = arith.addf %577, %588 : vector<1x128xf32>
    %c0_296 = arith.constant 0 : index
    %c49 = arith.constant 49 : index
    %590 = memref.load %arg2[%c0_296, %c49] : memref<4x64xf32, #tpu.memory_space<smem>>
    %591 = vector.broadcast %590 : f32 to vector<1x128xf32>
    %592 = arith.mulf %0, %591 : vector<1x128xf32>
    %c1_297 = arith.constant 1 : index
    %c49_298 = arith.constant 49 : index
    %593 = memref.load %arg2[%c1_297, %c49_298] : memref<4x64xf32, #tpu.memory_space<smem>>
    %594 = vector.broadcast %593 : f32 to vector<1x128xf32>
    %595 = arith.addf %592, %594 : vector<1x128xf32>
    %cst_299 = arith.constant 0.000000e+00 : f32
    %596 = vector.broadcast %cst_299 : f32 to vector<1x128xf32>
    %597 = arith.maximumf %595, %596 : vector<1x128xf32>
    %c2_300 = arith.constant 2 : index
    %c49_301 = arith.constant 49 : index
    %598 = memref.load %arg2[%c2_300, %c49_301] : memref<4x64xf32, #tpu.memory_space<smem>>
    %599 = vector.broadcast %598 : f32 to vector<1x128xf32>
    %600 = arith.mulf %597, %599 : vector<1x128xf32>
    %601 = arith.addf %589, %600 : vector<1x128xf32>
    %c0_302 = arith.constant 0 : index
    %c50 = arith.constant 50 : index
    %602 = memref.load %arg2[%c0_302, %c50] : memref<4x64xf32, #tpu.memory_space<smem>>
    %603 = vector.broadcast %602 : f32 to vector<1x128xf32>
    %604 = arith.mulf %0, %603 : vector<1x128xf32>
    %c1_303 = arith.constant 1 : index
    %c50_304 = arith.constant 50 : index
    %605 = memref.load %arg2[%c1_303, %c50_304] : memref<4x64xf32, #tpu.memory_space<smem>>
    %606 = vector.broadcast %605 : f32 to vector<1x128xf32>
    %607 = arith.addf %604, %606 : vector<1x128xf32>
    %cst_305 = arith.constant 0.000000e+00 : f32
    %608 = vector.broadcast %cst_305 : f32 to vector<1x128xf32>
    %609 = arith.maximumf %607, %608 : vector<1x128xf32>
    %c2_306 = arith.constant 2 : index
    %c50_307 = arith.constant 50 : index
    %610 = memref.load %arg2[%c2_306, %c50_307] : memref<4x64xf32, #tpu.memory_space<smem>>
    %611 = vector.broadcast %610 : f32 to vector<1x128xf32>
    %612 = arith.mulf %609, %611 : vector<1x128xf32>
    %613 = arith.addf %601, %612 : vector<1x128xf32>
    %c0_308 = arith.constant 0 : index
    %c51 = arith.constant 51 : index
    %614 = memref.load %arg2[%c0_308, %c51] : memref<4x64xf32, #tpu.memory_space<smem>>
    %615 = vector.broadcast %614 : f32 to vector<1x128xf32>
    %616 = arith.mulf %0, %615 : vector<1x128xf32>
    %c1_309 = arith.constant 1 : index
    %c51_310 = arith.constant 51 : index
    %617 = memref.load %arg2[%c1_309, %c51_310] : memref<4x64xf32, #tpu.memory_space<smem>>
    %618 = vector.broadcast %617 : f32 to vector<1x128xf32>
    %619 = arith.addf %616, %618 : vector<1x128xf32>
    %cst_311 = arith.constant 0.000000e+00 : f32
    %620 = vector.broadcast %cst_311 : f32 to vector<1x128xf32>
    %621 = arith.maximumf %619, %620 : vector<1x128xf32>
    %c2_312 = arith.constant 2 : index
    %c51_313 = arith.constant 51 : index
    %622 = memref.load %arg2[%c2_312, %c51_313] : memref<4x64xf32, #tpu.memory_space<smem>>
    %623 = vector.broadcast %622 : f32 to vector<1x128xf32>
    %624 = arith.mulf %621, %623 : vector<1x128xf32>
    %625 = arith.addf %613, %624 : vector<1x128xf32>
    %c0_314 = arith.constant 0 : index
    %c52 = arith.constant 52 : index
    %626 = memref.load %arg2[%c0_314, %c52] : memref<4x64xf32, #tpu.memory_space<smem>>
    %627 = vector.broadcast %626 : f32 to vector<1x128xf32>
    %628 = arith.mulf %0, %627 : vector<1x128xf32>
    %c1_315 = arith.constant 1 : index
    %c52_316 = arith.constant 52 : index
    %629 = memref.load %arg2[%c1_315, %c52_316] : memref<4x64xf32, #tpu.memory_space<smem>>
    %630 = vector.broadcast %629 : f32 to vector<1x128xf32>
    %631 = arith.addf %628, %630 : vector<1x128xf32>
    %cst_317 = arith.constant 0.000000e+00 : f32
    %632 = vector.broadcast %cst_317 : f32 to vector<1x128xf32>
    %633 = arith.maximumf %631, %632 : vector<1x128xf32>
    %c2_318 = arith.constant 2 : index
    %c52_319 = arith.constant 52 : index
    %634 = memref.load %arg2[%c2_318, %c52_319] : memref<4x64xf32, #tpu.memory_space<smem>>
    %635 = vector.broadcast %634 : f32 to vector<1x128xf32>
    %636 = arith.mulf %633, %635 : vector<1x128xf32>
    %637 = arith.addf %625, %636 : vector<1x128xf32>
    %c0_320 = arith.constant 0 : index
    %c53 = arith.constant 53 : index
    %638 = memref.load %arg2[%c0_320, %c53] : memref<4x64xf32, #tpu.memory_space<smem>>
    %639 = vector.broadcast %638 : f32 to vector<1x128xf32>
    %640 = arith.mulf %0, %639 : vector<1x128xf32>
    %c1_321 = arith.constant 1 : index
    %c53_322 = arith.constant 53 : index
    %641 = memref.load %arg2[%c1_321, %c53_322] : memref<4x64xf32, #tpu.memory_space<smem>>
    %642 = vector.broadcast %641 : f32 to vector<1x128xf32>
    %643 = arith.addf %640, %642 : vector<1x128xf32>
    %cst_323 = arith.constant 0.000000e+00 : f32
    %644 = vector.broadcast %cst_323 : f32 to vector<1x128xf32>
    %645 = arith.maximumf %643, %644 : vector<1x128xf32>
    %c2_324 = arith.constant 2 : index
    %c53_325 = arith.constant 53 : index
    %646 = memref.load %arg2[%c2_324, %c53_325] : memref<4x64xf32, #tpu.memory_space<smem>>
    %647 = vector.broadcast %646 : f32 to vector<1x128xf32>
    %648 = arith.mulf %645, %647 : vector<1x128xf32>
    %649 = arith.addf %637, %648 : vector<1x128xf32>
    %c0_326 = arith.constant 0 : index
    %c54 = arith.constant 54 : index
    %650 = memref.load %arg2[%c0_326, %c54] : memref<4x64xf32, #tpu.memory_space<smem>>
    %651 = vector.broadcast %650 : f32 to vector<1x128xf32>
    %652 = arith.mulf %0, %651 : vector<1x128xf32>
    %c1_327 = arith.constant 1 : index
    %c54_328 = arith.constant 54 : index
    %653 = memref.load %arg2[%c1_327, %c54_328] : memref<4x64xf32, #tpu.memory_space<smem>>
    %654 = vector.broadcast %653 : f32 to vector<1x128xf32>
    %655 = arith.addf %652, %654 : vector<1x128xf32>
    %cst_329 = arith.constant 0.000000e+00 : f32
    %656 = vector.broadcast %cst_329 : f32 to vector<1x128xf32>
    %657 = arith.maximumf %655, %656 : vector<1x128xf32>
    %c2_330 = arith.constant 2 : index
    %c54_331 = arith.constant 54 : index
    %658 = memref.load %arg2[%c2_330, %c54_331] : memref<4x64xf32, #tpu.memory_space<smem>>
    %659 = vector.broadcast %658 : f32 to vector<1x128xf32>
    %660 = arith.mulf %657, %659 : vector<1x128xf32>
    %661 = arith.addf %649, %660 : vector<1x128xf32>
    %c0_332 = arith.constant 0 : index
    %c55 = arith.constant 55 : index
    %662 = memref.load %arg2[%c0_332, %c55] : memref<4x64xf32, #tpu.memory_space<smem>>
    %663 = vector.broadcast %662 : f32 to vector<1x128xf32>
    %664 = arith.mulf %0, %663 : vector<1x128xf32>
    %c1_333 = arith.constant 1 : index
    %c55_334 = arith.constant 55 : index
    %665 = memref.load %arg2[%c1_333, %c55_334] : memref<4x64xf32, #tpu.memory_space<smem>>
    %666 = vector.broadcast %665 : f32 to vector<1x128xf32>
    %667 = arith.addf %664, %666 : vector<1x128xf32>
    %cst_335 = arith.constant 0.000000e+00 : f32
    %668 = vector.broadcast %cst_335 : f32 to vector<1x128xf32>
    %669 = arith.maximumf %667, %668 : vector<1x128xf32>
    %c2_336 = arith.constant 2 : index
    %c55_337 = arith.constant 55 : index
    %670 = memref.load %arg2[%c2_336, %c55_337] : memref<4x64xf32, #tpu.memory_space<smem>>
    %671 = vector.broadcast %670 : f32 to vector<1x128xf32>
    %672 = arith.mulf %669, %671 : vector<1x128xf32>
    %673 = arith.addf %661, %672 : vector<1x128xf32>
    %c0_338 = arith.constant 0 : index
    %c56 = arith.constant 56 : index
    %674 = memref.load %arg2[%c0_338, %c56] : memref<4x64xf32, #tpu.memory_space<smem>>
    %675 = vector.broadcast %674 : f32 to vector<1x128xf32>
    %676 = arith.mulf %0, %675 : vector<1x128xf32>
    %c1_339 = arith.constant 1 : index
    %c56_340 = arith.constant 56 : index
    %677 = memref.load %arg2[%c1_339, %c56_340] : memref<4x64xf32, #tpu.memory_space<smem>>
    %678 = vector.broadcast %677 : f32 to vector<1x128xf32>
    %679 = arith.addf %676, %678 : vector<1x128xf32>
    %cst_341 = arith.constant 0.000000e+00 : f32
    %680 = vector.broadcast %cst_341 : f32 to vector<1x128xf32>
    %681 = arith.maximumf %679, %680 : vector<1x128xf32>
    %c2_342 = arith.constant 2 : index
    %c56_343 = arith.constant 56 : index
    %682 = memref.load %arg2[%c2_342, %c56_343] : memref<4x64xf32, #tpu.memory_space<smem>>
    %683 = vector.broadcast %682 : f32 to vector<1x128xf32>
    %684 = arith.mulf %681, %683 : vector<1x128xf32>
    %685 = arith.addf %673, %684 : vector<1x128xf32>
    %c0_344 = arith.constant 0 : index
    %c57 = arith.constant 57 : index
    %686 = memref.load %arg2[%c0_344, %c57] : memref<4x64xf32, #tpu.memory_space<smem>>
    %687 = vector.broadcast %686 : f32 to vector<1x128xf32>
    %688 = arith.mulf %0, %687 : vector<1x128xf32>
    %c1_345 = arith.constant 1 : index
    %c57_346 = arith.constant 57 : index
    %689 = memref.load %arg2[%c1_345, %c57_346] : memref<4x64xf32, #tpu.memory_space<smem>>
    %690 = vector.broadcast %689 : f32 to vector<1x128xf32>
    %691 = arith.addf %688, %690 : vector<1x128xf32>
    %cst_347 = arith.constant 0.000000e+00 : f32
    %692 = vector.broadcast %cst_347 : f32 to vector<1x128xf32>
    %693 = arith.maximumf %691, %692 : vector<1x128xf32>
    %c2_348 = arith.constant 2 : index
    %c57_349 = arith.constant 57 : index
    %694 = memref.load %arg2[%c2_348, %c57_349] : memref<4x64xf32, #tpu.memory_space<smem>>
    %695 = vector.broadcast %694 : f32 to vector<1x128xf32>
    %696 = arith.mulf %693, %695 : vector<1x128xf32>
    %697 = arith.addf %685, %696 : vector<1x128xf32>
    %c0_350 = arith.constant 0 : index
    %c58 = arith.constant 58 : index
    %698 = memref.load %arg2[%c0_350, %c58] : memref<4x64xf32, #tpu.memory_space<smem>>
    %699 = vector.broadcast %698 : f32 to vector<1x128xf32>
    %700 = arith.mulf %0, %699 : vector<1x128xf32>
    %c1_351 = arith.constant 1 : index
    %c58_352 = arith.constant 58 : index
    %701 = memref.load %arg2[%c1_351, %c58_352] : memref<4x64xf32, #tpu.memory_space<smem>>
    %702 = vector.broadcast %701 : f32 to vector<1x128xf32>
    %703 = arith.addf %700, %702 : vector<1x128xf32>
    %cst_353 = arith.constant 0.000000e+00 : f32
    %704 = vector.broadcast %cst_353 : f32 to vector<1x128xf32>
    %705 = arith.maximumf %703, %704 : vector<1x128xf32>
    %c2_354 = arith.constant 2 : index
    %c58_355 = arith.constant 58 : index
    %706 = memref.load %arg2[%c2_354, %c58_355] : memref<4x64xf32, #tpu.memory_space<smem>>
    %707 = vector.broadcast %706 : f32 to vector<1x128xf32>
    %708 = arith.mulf %705, %707 : vector<1x128xf32>
    %709 = arith.addf %697, %708 : vector<1x128xf32>
    %c0_356 = arith.constant 0 : index
    %c59 = arith.constant 59 : index
    %710 = memref.load %arg2[%c0_356, %c59] : memref<4x64xf32, #tpu.memory_space<smem>>
    %711 = vector.broadcast %710 : f32 to vector<1x128xf32>
    %712 = arith.mulf %0, %711 : vector<1x128xf32>
    %c1_357 = arith.constant 1 : index
    %c59_358 = arith.constant 59 : index
    %713 = memref.load %arg2[%c1_357, %c59_358] : memref<4x64xf32, #tpu.memory_space<smem>>
    %714 = vector.broadcast %713 : f32 to vector<1x128xf32>
    %715 = arith.addf %712, %714 : vector<1x128xf32>
    %cst_359 = arith.constant 0.000000e+00 : f32
    %716 = vector.broadcast %cst_359 : f32 to vector<1x128xf32>
    %717 = arith.maximumf %715, %716 : vector<1x128xf32>
    %c2_360 = arith.constant 2 : index
    %c59_361 = arith.constant 59 : index
    %718 = memref.load %arg2[%c2_360, %c59_361] : memref<4x64xf32, #tpu.memory_space<smem>>
    %719 = vector.broadcast %718 : f32 to vector<1x128xf32>
    %720 = arith.mulf %717, %719 : vector<1x128xf32>
    %721 = arith.addf %709, %720 : vector<1x128xf32>
    %c0_362 = arith.constant 0 : index
    %c60 = arith.constant 60 : index
    %722 = memref.load %arg2[%c0_362, %c60] : memref<4x64xf32, #tpu.memory_space<smem>>
    %723 = vector.broadcast %722 : f32 to vector<1x128xf32>
    %724 = arith.mulf %0, %723 : vector<1x128xf32>
    %c1_363 = arith.constant 1 : index
    %c60_364 = arith.constant 60 : index
    %725 = memref.load %arg2[%c1_363, %c60_364] : memref<4x64xf32, #tpu.memory_space<smem>>
    %726 = vector.broadcast %725 : f32 to vector<1x128xf32>
    %727 = arith.addf %724, %726 : vector<1x128xf32>
    %cst_365 = arith.constant 0.000000e+00 : f32
    %728 = vector.broadcast %cst_365 : f32 to vector<1x128xf32>
    %729 = arith.maximumf %727, %728 : vector<1x128xf32>
    %c2_366 = arith.constant 2 : index
    %c60_367 = arith.constant 60 : index
    %730 = memref.load %arg2[%c2_366, %c60_367] : memref<4x64xf32, #tpu.memory_space<smem>>
    %731 = vector.broadcast %730 : f32 to vector<1x128xf32>
    %732 = arith.mulf %729, %731 : vector<1x128xf32>
    %733 = arith.addf %721, %732 : vector<1x128xf32>
    %c0_368 = arith.constant 0 : index
    %c61 = arith.constant 61 : index
    %734 = memref.load %arg2[%c0_368, %c61] : memref<4x64xf32, #tpu.memory_space<smem>>
    %735 = vector.broadcast %734 : f32 to vector<1x128xf32>
    %736 = arith.mulf %0, %735 : vector<1x128xf32>
    %c1_369 = arith.constant 1 : index
    %c61_370 = arith.constant 61 : index
    %737 = memref.load %arg2[%c1_369, %c61_370] : memref<4x64xf32, #tpu.memory_space<smem>>
    %738 = vector.broadcast %737 : f32 to vector<1x128xf32>
    %739 = arith.addf %736, %738 : vector<1x128xf32>
    %cst_371 = arith.constant 0.000000e+00 : f32
    %740 = vector.broadcast %cst_371 : f32 to vector<1x128xf32>
    %741 = arith.maximumf %739, %740 : vector<1x128xf32>
    %c2_372 = arith.constant 2 : index
    %c61_373 = arith.constant 61 : index
    %742 = memref.load %arg2[%c2_372, %c61_373] : memref<4x64xf32, #tpu.memory_space<smem>>
    %743 = vector.broadcast %742 : f32 to vector<1x128xf32>
    %744 = arith.mulf %741, %743 : vector<1x128xf32>
    %745 = arith.addf %733, %744 : vector<1x128xf32>
    %c0_374 = arith.constant 0 : index
    %c62 = arith.constant 62 : index
    %746 = memref.load %arg2[%c0_374, %c62] : memref<4x64xf32, #tpu.memory_space<smem>>
    %747 = vector.broadcast %746 : f32 to vector<1x128xf32>
    %748 = arith.mulf %0, %747 : vector<1x128xf32>
    %c1_375 = arith.constant 1 : index
    %c62_376 = arith.constant 62 : index
    %749 = memref.load %arg2[%c1_375, %c62_376] : memref<4x64xf32, #tpu.memory_space<smem>>
    %750 = vector.broadcast %749 : f32 to vector<1x128xf32>
    %751 = arith.addf %748, %750 : vector<1x128xf32>
    %cst_377 = arith.constant 0.000000e+00 : f32
    %752 = vector.broadcast %cst_377 : f32 to vector<1x128xf32>
    %753 = arith.maximumf %751, %752 : vector<1x128xf32>
    %c2_378 = arith.constant 2 : index
    %c62_379 = arith.constant 62 : index
    %754 = memref.load %arg2[%c2_378, %c62_379] : memref<4x64xf32, #tpu.memory_space<smem>>
    %755 = vector.broadcast %754 : f32 to vector<1x128xf32>
    %756 = arith.mulf %753, %755 : vector<1x128xf32>
    %757 = arith.addf %745, %756 : vector<1x128xf32>
    %c0_380 = arith.constant 0 : index
    %c63 = arith.constant 63 : index
    %758 = memref.load %arg2[%c0_380, %c63] : memref<4x64xf32, #tpu.memory_space<smem>>
    %759 = vector.broadcast %758 : f32 to vector<1x128xf32>
    %760 = arith.mulf %0, %759 : vector<1x128xf32>
    %c1_381 = arith.constant 1 : index
    %c63_382 = arith.constant 63 : index
    %761 = memref.load %arg2[%c1_381, %c63_382] : memref<4x64xf32, #tpu.memory_space<smem>>
    %762 = vector.broadcast %761 : f32 to vector<1x128xf32>
    %763 = arith.addf %760, %762 : vector<1x128xf32>
    %cst_383 = arith.constant 0.000000e+00 : f32
    %764 = vector.broadcast %cst_383 : f32 to vector<1x128xf32>
    %765 = arith.maximumf %763, %764 : vector<1x128xf32>
    %c2_384 = arith.constant 2 : index
    %c63_385 = arith.constant 63 : index
    %766 = memref.load %arg2[%c2_384, %c63_385] : memref<4x64xf32, #tpu.memory_space<smem>>
    %767 = vector.broadcast %766 : f32 to vector<1x128xf32>
    %768 = arith.mulf %765, %767 : vector<1x128xf32>
    %769 = arith.addf %757, %768 : vector<1x128xf32>
    %c3_386 = arith.constant 3 : index
    %c0_387 = arith.constant 0 : index
    %770 = memref.load %arg2[%c3_386, %c0_387] : memref<4x64xf32, #tpu.memory_space<smem>>
    %771 = vector.broadcast %770 : f32 to vector<1x128xf32>
    %772 = arith.addf %769, %771 : vector<1x128xf32>
    %cst_388 = arith.constant 0.000000e+00 : f32
    %773 = vector.broadcast %cst_388 : f32 to vector<1x128xf32>
    %774 = arith.maximumf %772, %773 : vector<1x128xf32>
    %c0_389 = arith.constant 0 : index
    %c0_390 = arith.constant 0 : index
    %775 = vector.load %arg3[%c0_389, %c0_390] : memref<1x128xf32, #tpu.memory_space<vmem>>, vector<1x128xf32>
    tpu.vector_store %arg3[%c0_389, %c0_390], %774 {strides = array<i32>} : memref<1x128xf32, #tpu.memory_space<vmem>>, vector<1x128xf32>,
    return
  }
  func.func @transform_0(%arg0: i32) -> (i32, i32) {
    %c0_i32 = arith.constant 0 : i32
    %c0_i32_0 = arith.constant 0 : i32
    return %arg0, %c0_i32 : i32, i32
  }
  func.func @transform_1(%arg0: i32) -> (i32, i32) {
    %c0_i32 = arith.constant 0 : i32
    %c0_i32_0 = arith.constant 0 : i32
    %c0_i32_1 = arith.constant 0 : i32
    return %c0_i32, %c0_i32_0 : i32, i32
  }
  func.func @transform_2(%arg0: i32) -> (i32, i32) {
    %c0_i32 = arith.constant 0 : i32
    %c0_i32_0 = arith.constant 0 : i32
    return %arg0, %c0_i32 : i32, i32
  }
}

</mosaic_0001>

<llo_original>
// kernel: tpu_custom_call.1
$region0: #{tpu_custom_call.1}
  #allocation0 [shape = 'u32[]', space=smem, size = 0x4, offset = 0x4, fixed_abs, tag = 'smem constant byte address 0x4 - core index']
  #allocation1 [shape = 'u32[72,128]{1,0:T(1,128)}', space=vmem, size = 0x9000, scoped, tag = 'internal scratch']
  %s0 = inlined_call_operand.hbm [shape: f32[1,128], index: 0, kind: input, shape index: {}]
  %s1 = inlined_call_operand.hbm [shape: f32[4,64], index: 1, kind: input, shape index: {}]
  %s2 = inlined_call_operand.hbm [shape: f32[1,128], index: 2, kind: output, shape index: {}]
  %s3 = sld [smem:[#allocation0]]
  $region26: #{tpu_custom_call.1} parent=0
    _
  %s5 = ssub.s32 1, %s3
  %s6 = scalar_select 0, %s5, %s3
  $region1: #{tpu_custom_call.1} parent=0
    #allocation2 [shape = 'u8[512]{0}', space=vmem, size = 0x400, scoped, tag = 'input window, operand 0, single buffered']
    #allocation3 [shape = 's32[1]{0}', space=sflag, size = 0x4, scoped, tag = 'scoped memory for tpu_custom_call.1']
    #allocation4 [shape = 's32[1]{0}', space=sflag, size = 0x4, scoped, tag = 'scoped memory for tpu_custom_call.1']
    #allocation5 [shape = 's32[1]{0}', space=sflag, size = 0x4, scoped, tag = 'scoped memory for tpu_custom_call.1']
    #allocation6 [shape = 'u8[2048]{0}', space=smem, size = 0x800, scoped, tag = 'input window, operand 1, single buffered']
    #allocation7 [shape = 'u8[512]{0}', space=vmem, size = 0x400, scoped, tag = 'output window, operand 0, single buffered']
    %7 = vsyncpa [#allocation3], 0
    %8 = vsyncpa [#allocation5], 0
    %9 = vsyncpa [#allocation4], 0
    // Predicated region
    $region2: #{tpu_custom_call.1} parent=1 // pred_check
      _
    $region3: #{tpu_custom_call.1} parent=1 // pred_check_branch
      %11 = sbr.rel (0) target = $region5
    $region4: #{tpu_custom_call.1} parent=1 // pred_region
      %13 = vsyncadd [#allocation3], 0
      %s15 = sshll.u32 %s0, 4
      %s16 = int_to_ptr.hbm [resolvable:$true] %s15
      %s17 = sshll.u32 [#allocation2], 4
      %s18 = int_to_ptr.vmem [resolvable:$true] %s17
      %20 = dma.hbm_to_vmem [thread:$0]  %s16, 16, %s18, [#allocation3]
    $region5: #{tpu_custom_call.1} parent=1 // pred_fallthru
      _
    // Predicated region
    $region6: #{tpu_custom_call.1} parent=1 // pred_check
      _
    $region7: #{tpu_custom_call.1} parent=1 // pred_check_branch
      %22 = sbr.rel (0) target = $region9
    $region8: #{tpu_custom_call.1} parent=1 // pred_region
      %24 = vsyncadd [#allocation5], 0
      %s26 = sshll.u32 %s1, 4
      %s27 = int_to_ptr.hbm [resolvable:$true] %s26
      %29 = dma.hbm_to_smem %s27, 64, [#allocation6], [#allocation5]
    $region9: #{tpu_custom_call.1} parent=1 // pred_fallthru
      _
    // Predicated region
    $region10: #{tpu_custom_call.1} parent=1 // pred_check
      _
    $region11: #{tpu_custom_call.1} parent=1 // pred_check_branch
      %31 = sbr.rel (0) target = $region13
    $region12: #{tpu_custom_call.1} parent=1 // pred_region
      %33 = dma.done [#allocation3], 16
    $region13: #{tpu_custom_call.1} parent=1 // pred_fallthru
      _
    // Predicated region
    $region14: #{tpu_custom_call.1} parent=1 // pred_check
      _
    $region15: #{tpu_custom_call.1} parent=1 // pred_check_branch
      %35 = sbr.rel (0) target = $region17
    $region16: #{tpu_custom_call.1} parent=1 // pred_region
      %37 = dma.done [#allocation5], 64
    $region17: #{tpu_custom_call.1} parent=1 // pred_fallthru
      _
    %38 = sfence
    %v39 = vld [vmem:[#allocation2] sm:$0x1]
    %s40 = sld [smem:[#allocation6]]
    %v41 = vstv %s40
    %v42 = vmul.f32 %v39, %v41
    %s43 = sld [smem:[#allocation6 + $0x80]]
    %v44 = vstv %s43
    %v45 = vadd.f32 %v42, %v44
    %v46 = vmax.f32 %v45, 0.0
    %s47 = sld [smem:[#allocation6 + $0x100]]
    %v48 = vstv %s47
    %v49 = vmul.f32 %v46, %v48
    %v50 = vadd.f32 %v49, 0.0
    %s51 = sld [smem:[#allocation6 + $0x1]]
    %v52 = vstv %s51
    %v53 = vmul.f32 %v39, %v52
    %s54 = sld [smem:[#allocation6 + $0x81]]
    %v55 = vstv %s54
    %v56 = vadd.f32 %v53, %v55
    %v57 = vmax.f32 %v56, 0.0
    %s58 = sld [smem:[#allocation6 + $0x101]]
    %v59 = vstv %s58
    %v60 = vmul.f32 %v57, %v59
    %v61 = vadd.f32 %v50, %v60
    %s62 = sld [smem:[#allocation6 + $0x2]]
    %v63 = vstv %s62
    %v64 = vmul.f32 %v39, %v63
    %s65 = sld [smem:[#allocation6 + $0x82]]
    %v66 = vstv %s65
    %v67 = vadd.f32 %v64, %v66
    %v68 = vmax.f32 %v67, 0.0
    %s69 = sld [smem:[#allocation6 + $0x102]]
    %v70 = vstv %s69
    %v71 = vmul.f32 %v68, %v70
    %v72 = vadd.f32 %v61, %v71
    %s73 = sld [smem:[#allocation6 + $0x3]]
    %v74 = vstv %s73
    %v75 = vmul.f32 %v39, %v74
    %s76 = sld [smem:[#allocation6 + $0x83]]
    %v77 = vstv %s76
    %v78 = vadd.f32 %v75, %v77
    %v79 = vmax.f32 %v78, 0.0
    %s80 = sld [smem:[#allocation6 + $0x103]]
    %v81 = vstv %s80
    %v82 = vmul.f32 %v79, %v81
    %v83 = vadd.f32 %v72, %v82
    %s84 = sld [smem:[#allocation6 + $0x4]]
    %v85 = vstv %s84
    %v86 = vmul.f32 %v39, %v85
    %s87 = sld [smem:[#allocation6 + $0x84]]
    %v88 = vstv %s87
    %v89 = vadd.f32 %v86, %v88
    %v90 = vmax.f32 %v89, 0.0
    %s91 = sld [smem:[#allocation6 + $0x104]]
    %v92 = vstv %s91
    %v93 = vmul.f32 %v90, %v92
    %v94 = vadd.f32 %v83, %v93
    %s95 = sld [smem:[#allocation6 + $0x5]]
    %v96 = vstv %s95
    %v97 = vmul.f32 %v39, %v96
    %s98 = sld [smem:[#allocation6 + $0x85]]
    %v99 = vstv %s98
    %v100 = vadd.f32 %v97, %v99
    %v101 = vmax.f32 %v100, 0.0
    %s102 = sld [smem:[#allocation6 + $0x105]]
    %v103 = vstv %s102
    %v104 = vmul.f32 %v101, %v103
    %v105 = vadd.f32 %v94, %v104
    %s106 = sld [smem:[#allocation6 + $0x6]]
    %v107 = vstv %s106
    %v108 = vmul.f32 %v39, %v107
    %s109 = sld [smem:[#allocation6 + $0x86]]
    %v110 = vstv %s109
    %v111 = vadd.f32 %v108, %v110
    %v112 = vmax.f32 %v111, 0.0
    %s113 = sld [smem:[#allocation6 + $0x106]]
    %v114 = vstv %s113
    %v115 = vmul.f32 %v112, %v114
    %v116 = vadd.f32 %v105, %v115
    %s117 = sld [smem:[#allocation6 + $0x7]]
    %v118 = vstv %s117
    %v119 = vmul.f32 %v39, %v118
    %s120 = sld [smem:[#allocation6 + $0x87]]
    %v121 = vstv %s120
    %v122 = vadd.f32 %v119, %v121
    %v123 = vmax.f32 %v122, 0.0
    %s124 = sld [smem:[#allocation6 + $0x107]]
    %v125 = vstv %s124
    %v126 = vmul.f32 %v123, %v125
    %v127 = vadd.f32 %v116, %v126
    %s128 = sld [smem:[#allocation6 + $0x8]]
    %v129 = vstv %s128
    %v130 = vmul.f32 %v39, %v129
    %s131 = sld [smem:[#allocation6 + $0x88]]
    %v132 = vstv %s131
    %v133 = vadd.f32 %v130, %v132
    %v134 = vmax.f32 %v133, 0.0
    %s135 = sld [smem:[#allocation6 + $0x108]]
    %v136 = vstv %s135
    %v137 = vmul.f32 %v134, %v136
    %v138 = vadd.f32 %v127, %v137
    %s139 = sld [smem:[#allocation6 + $0x9]]
    %v140 = vstv %s139
    %v141 = vmul.f32 %v39, %v140
    %s142 = sld [smem:[#allocation6 + $0x89]]
    %v143 = vstv %s142
    %v144 = vadd.f32 %v141, %v143
    %v145 = vmax.f32 %v144, 0.0
    %s146 = sld [smem:[#allocation6 + $0x109]]
    %v147 = vstv %s146
    %v148 = vmul.f32 %v145, %v147
    %v149 = vadd.f32 %v138, %v148
    %s150 = sld [smem:[#allocation6 + $0xa]]
    %v151 = vstv %s150
    %v152 = vmul.f32 %v39, %v151
    %s153 = sld [smem:[#allocation6 + $0x8a]]
    %v154 = vstv %s153
    %v155 = vadd.f32 %v152, %v154
    %v156 = vmax.f32 %v155, 0.0
    %s157 = sld [smem:[#allocation6 + $0x10a]]
    %v158 = vstv %s157
    %v159 = vmul.f32 %v156, %v158
    %v160 = vadd.f32 %v149, %v159
    %s161 = sld [smem:[#allocation6 + $0xb]]
    %v162 = vstv %s161
    %v163 = vmul.f32 %v39, %v162
    %s164 = sld [smem:[#allocation6 + $0x8b]]
    %v165 = vstv %s164
    %v166 = vadd.f32 %v163, %v165
    %v167 = vmax.f32 %v166, 0.0
    %s168 = sld [smem:[#allocation6 + $0x10b]]
    %v169 = vstv %s168
    %v170 = vmul.f32 %v167, %v169
    %v171 = vadd.f32 %v160, %v170
    %s172 = sld [smem:[#allocation6 + $0xc]]
    %v173 = vstv %s172
    %v174 = vmul.f32 %v39, %v173
    %s175 = sld [smem:[#allocation6 + $0x8c]]
    %v176 = vstv %s175
    %v177 = vadd.f32 %v174, %v176
    %v178 = vmax.f32 %v177, 0.0
    %s179 = sld [smem:[#allocation6 + $0x10c]]
    %v180 = vstv %s179
    %v181 = vmul.f32 %v178, %v180
    %v182 = vadd.f32 %v171, %v181
    %s183 = sld [smem:[#allocation6 + $0xd]]
    %v184 = vstv %s183
    %v185 = vmul.f32 %v39, %v184
    %s186 = sld [smem:[#allocation6 + $0x8d]]
    %v187 = vstv %s186
    %v188 = vadd.f32 %v185, %v187
    %v189 = vmax.f32 %v188, 0.0
    %s190 = sld [smem:[#allocation6 + $0x10d]]
    %v191 = vstv %s190
    %v192 = vmul.f32 %v189, %v191
    %v193 = vadd.f32 %v182, %v192
    %s194 = sld [smem:[#allocation6 + $0xe]]
    %v195 = vstv %s194
    %v196 = vmul.f32 %v39, %v195
    %s197 = sld [smem:[#allocation6 + $0x8e]]
    %v198 = vstv %s197
    %v199 = vadd.f32 %v196, %v198
    %v200 = vmax.f32 %v199, 0.0
    %s201 = sld [smem:[#allocation6 + $0x10e]]
    %v202 = vstv %s201
    %v203 = vmul.f32 %v200, %v202
    %v204 = vadd.f32 %v193, %v203
    %s205 = sld [smem:[#allocation6 + $0xf]]
    %v206 = vstv %s205
    %v207 = vmul.f32 %v39, %v206
    %s208 = sld [smem:[#allocation6 + $0x8f]]
    %v209 = vstv %s208
    %v210 = vadd.f32 %v207, %v209
    %v211 = vmax.f32 %v210, 0.0
    %s212 = sld [smem:[#allocation6 + $0x10f]]
    %v213 = vstv %s212
    %v214 = vmul.f32 %v211, %v213
    %v215 = vadd.f32 %v204, %v214
    %s216 = sld [smem:[#allocation6 + $0x10]]
    %v217 = vstv %s216
    %v218 = vmul.f32 %v39, %v217
    %s219 = sld [smem:[#allocation6 + $0x90]]
    %v220 = vstv %s219
    %v221 = vadd.f32 %v218, %v220
    %v222 = vmax.f32 %v221, 0.0
    %s223 = sld [smem:[#allocation6 + $0x110]]
    %v224 = vstv %s223
    %v225 = vmul.f32 %v222, %v224
    %v226 = vadd.f32 %v215, %v225
    %s227 = sld [smem:[#allocation6 + $0x11]]
    %v228 = vstv %s227
    %v229 = vmul.f32 %v39, %v228
    %s230 = sld [smem:[#allocation6 + $0x91]]
    %v231 = vstv %s230
    %v232 = vadd.f32 %v229, %v231
    %v233 = vmax.f32 %v232, 0.0
    %s234 = sld [smem:[#allocation6 + $0x111]]
    %v235 = vstv %s234
    %v236 = vmul.f32 %v233, %v235
    %v237 = vadd.f32 %v226, %v236
    %s238 = sld [smem:[#allocation6 + $0x12]]
    %v239 = vstv %s238
    %v240 = vmul.f32 %v39, %v239
    %s241 = sld [smem:[#allocation6 + $0x92]]
    %v242 = vstv %s241
    %v243 = vadd.f32 %v240, %v242
    %v244 = vmax.f32 %v243, 0.0
    %s245 = sld [smem:[#allocation6 + $0x112]]
    %v246 = vstv %s245
    %v247 = vmul.f32 %v244, %v246
    %v248 = vadd.f32 %v237, %v247
    %s249 = sld [smem:[#allocation6 + $0x13]]
    %v250 = vstv %s249
    %v251 = vmul.f32 %v39, %v250
    %s252 = sld [smem:[#allocation6 + $0x93]]
    %v253 = vstv %s252
    %v254 = vadd.f32 %v251, %v253
    %v255 = vmax.f32 %v254, 0.0
    %s256 = sld [smem:[#allocation6 + $0x113]]
    %v257 = vstv %s256
    %v258 = vmul.f32 %v255, %v257
    %v259 = vadd.f32 %v248, %v258
    %s260 = sld [smem:[#allocation6 + $0x14]]
    %v261 = vstv %s260
    %v262 = vmul.f32 %v39, %v261
    %s263 = sld [smem:[#allocation6 + $0x94]]
    %v264 = vstv %s263
    %v265 = vadd.f32 %v262, %v264
    %v266 = vmax.f32 %v265, 0.0
    %s267 = sld [smem:[#allocation6 + $0x114]]
    %v268 = vstv %s267
    %v269 = vmul.f32 %v266, %v268
    %v270 = vadd.f32 %v259, %v269
    %s271 = sld [smem:[#allocation6 + $0x15]]
    %v272 = vstv %s271
    %v273 = vmul.f32 %v39, %v272
    %s274 = sld [smem:[#allocation6 + $0x95]]
    %v275 = vstv %s274
    %v276 = vadd.f32 %v273, %v275
    %v277 = vmax.f32 %v276, 0.0
    %s278 = sld [smem:[#allocation6 + $0x115]]
    %v279 = vstv %s278
    %v280 = vmul.f32 %v277, %v279
    %v281 = vadd.f32 %v270, %v280
    %s282 = sld [smem:[#allocation6 + $0x16]]
    %v283 = vstv %s282
    %v284 = vmul.f32 %v39, %v283
    %s285 = sld [smem:[#allocation6 + $0x96]]
    %v286 = vstv %s285
    %v287 = vadd.f32 %v284, %v286
    %v288 = vmax.f32 %v287, 0.0
    %s289 = sld [smem:[#allocation6 + $0x116]]
    %v290 = vstv %s289
    %v291 = vmul.f32 %v288, %v290
    %v292 = vadd.f32 %v281, %v291
    %s293 = sld [smem:[#allocation6 + $0x17]]
    %v294 = vstv %s293
    %v295 = vmul.f32 %v39, %v294
    %s296 = sld [smem:[#allocation6 + $0x97]]
    %v297 = vstv %s296
    %v298 = vadd.f32 %v295, %v297
    %v299 = vmax.f32 %v298, 0.0
    %s300 = sld [smem:[#allocation6 + $0x117]]
    %v301 = vstv %s300
    %v302 = vmul.f32 %v299, %v301
    %v303 = vadd.f32 %v292, %v302
    %s304 = sld [smem:[#allocation6 + $0x18]]
    %v305 = vstv %s304
    %v306 = vmul.f32 %v39, %v305
    %s307 = sld [smem:[#allocation6 + $0x98]]
    %v308 = vstv %s307
    %v309 = vadd.f32 %v306, %v308
    %v310 = vmax.f32 %v309, 0.0
    %s311 = sld [smem:[#allocation6 + $0x118]]
    %v312 = vstv %s311
    %v313 = vmul.f32 %v310, %v312
    %v314 = vadd.f32 %v303, %v313
    %s315 = sld [smem:[#allocation6 + $0x19]]
    %v316 = vstv %s315
    %v317 = vmul.f32 %v39, %v316
    %s318 = sld [smem:[#allocation6 + $0x99]]
    %v319 = vstv %s318
    %v320 = vadd.f32 %v317, %v319
    %v321 = vmax.f32 %v320, 0.0
    %s322 = sld [smem:[#allocation6 + $0x119]]
    %v323 = vstv %s322
    %v324 = vmul.f32 %v321, %v323
    %v325 = vadd.f32 %v314, %v324
    %s326 = sld [smem:[#allocation6 + $0x1a]]
    %v327 = vstv %s326
    %v328 = vmul.f32 %v39, %v327
    %s329 = sld [smem:[#allocation6 + $0x9a]]
    %v330 = vstv %s329
    %v331 = vadd.f32 %v328, %v330
    %v332 = vmax.f32 %v331, 0.0
    %s333 = sld [smem:[#allocation6 + $0x11a]]
    %v334 = vstv %s333
    %v335 = vmul.f32 %v332, %v334
    %v336 = vadd.f32 %v325, %v335
    %s337 = sld [smem:[#allocation6 + $0x1b]]
    %v338 = vstv %s337
    %v339 = vmul.f32 %v39, %v338
    %s340 = sld [smem:[#allocation6 + $0x9b]]
    %v341 = vstv %s340
    %v342 = vadd.f32 %v339, %v341
    %v343 = vmax.f32 %v342, 0.0
    %s344 = sld [smem:[#allocation6 + $0x11b]]
    %v345 = vstv %s344
    %v346 = vmul.f32 %v343, %v345
    %v347 = vadd.f32 %v336, %v346
    %s348 = sld [smem:[#allocation6 + $0x1c]]
    %v349 = vstv %s348
    %v350 = vmul.f32 %v39, %v349
    %s351 = sld [smem:[#allocation6 + $0x9c]]
    %v352 = vstv %s351
    %v353 = vadd.f32 %v350, %v352
    %v354 = vmax.f32 %v353, 0.0
    %s355 = sld [smem:[#allocation6 + $0x11c]]
    %v356 = vstv %s355
    %v357 = vmul.f32 %v354, %v356
    %v358 = vadd.f32 %v347, %v357
    %s359 = sld [smem:[#allocation6 + $0x1d]]
    %v360 = vstv %s359
    %v361 = vmul.f32 %v39, %v360
    %s362 = sld [smem:[#allocation6 + $0x9d]]
    %v363 = vstv %s362
    %v364 = vadd.f32 %v361, %v363
    %v365 = vmax.f32 %v364, 0.0
    %s366 = sld [smem:[#allocation6 + $0x11d]]
    %v367 = vstv %s366
    %v368 = vmul.f32 %v365, %v367
    %v369 = vadd.f32 %v358, %v368
    %s370 = sld [smem:[#allocation6 + $0x1e]]
    %v371 = vstv %s370
    %v372 = vmul.f32 %v39, %v371
    %s373 = sld [smem:[#allocation6 + $0x9e]]
    %v374 = vstv %s373
    %v375 = vadd.f32 %v372, %v374
    %v376 = vmax.f32 %v375, 0.0
    %s377 = sld [smem:[#allocation6 + $0x11e]]
    %v378 = vstv %s377
    %v379 = vmul.f32 %v376, %v378
    %v380 = vadd.f32 %v369, %v379
    %s381 = sld [smem:[#allocation6 + $0x1f]]
    %v382 = vstv %s381
    %v383 = vmul.f32 %v39, %v382
    %s384 = sld [smem:[#allocation6 + $0x9f]]
    %v385 = vstv %s384
    %v386 = vadd.f32 %v383, %v385
    %v387 = vmax.f32 %v386, 0.0
    %s388 = sld [smem:[#allocation6 + $0x11f]]
    %v389 = vstv %s388
    %v390 = vmul.f32 %v387, %v389
    %v391 = vadd.f32 %v380, %v390
    %s392 = sld [smem:[#allocation6 + $0x20]]
    %v393 = vstv %s392
    %v394 = vmul.f32 %v39, %v393
    %s395 = sld [smem:[#allocation6 + $0xa0]]
    %v396 = vstv %s395
    %v397 = vadd.f32 %v394, %v396
    %v398 = vmax.f32 %v397, 0.0
    %s399 = sld [smem:[#allocation6 + $0x120]]
    %v400 = vstv %s399
    %v401 = vmul.f32 %v398, %v400
    %v402 = vadd.f32 %v391, %v401
    %s403 = sld [smem:[#allocation6 + $0x21]]
    %v404 = vstv %s403
    %v405 = vmul.f32 %v39, %v404
    %s406 = sld [smem:[#allocation6 + $0xa1]]
    %v407 = vstv %s406
    %v408 = vadd.f32 %v405, %v407
    %v409 = vmax.f32 %v408, 0.0
    %s410 = sld [smem:[#allocation6 + $0x121]]
    %v411 = vstv %s410
    %v412 = vmul.f32 %v409, %v411
    %v413 = vadd.f32 %v402, %v412
    %s414 = sld [smem:[#allocation6 + $0x22]]
    %v415 = vstv %s414
    %v416 = vmul.f32 %v39, %v415
    %s417 = sld [smem:[#allocation6 + $0xa2]]
    %v418 = vstv %s417
    %v419 = vadd.f32 %v416, %v418
    %v420 = vmax.f32 %v419, 0.0
    %s421 = sld [smem:[#allocation6 + $0x122]]
    %v422 = vstv %s421
    %v423 = vmul.f32 %v420, %v422
    %v424 = vadd.f32 %v413, %v423
    %s425 = sld [smem:[#allocation6 + $0x23]]
    %v426 = vstv %s425
    %v427 = vmul.f32 %v39, %v426
    %s428 = sld [smem:[#allocation6 + $0xa3]]
    %v429 = vstv %s428
    %v430 = vadd.f32 %v427, %v429
    %v431 = vmax.f32 %v430, 0.0
    %s432 = sld [smem:[#allocation6 + $0x123]]
    %v433 = vstv %s432
    %v434 = vmul.f32 %v431, %v433
    %v435 = vadd.f32 %v424, %v434
    %s436 = sld [smem:[#allocation6 + $0x24]]
    %v437 = vstv %s436
    %v438 = vmul.f32 %v39, %v437
    %s439 = sld [smem:[#allocation6 + $0xa4]]
    %v440 = vstv %s439
    %v441 = vadd.f32 %v438, %v440
    %v442 = vmax.f32 %v441, 0.0
    %s443 = sld [smem:[#allocation6 + $0x124]]
    %v444 = vstv %s443
    %v445 = vmul.f32 %v442, %v444
    %v446 = vadd.f32 %v435, %v445
    %s447 = sld [smem:[#allocation6 + $0x25]]
    %v448 = vstv %s447
    %v449 = vmul.f32 %v39, %v448
    %s450 = sld [smem:[#allocation6 + $0xa5]]
    %v451 = vstv %s450
    %v452 = vadd.f32 %v449, %v451
    %v453 = vmax.f32 %v452, 0.0
    %s454 = sld [smem:[#allocation6 + $0x125]]
    %v455 = vstv %s454
    %v456 = vmul.f32 %v453, %v455
    %v457 = vadd.f32 %v446, %v456
    %s458 = sld [smem:[#allocation6 + $0x26]]
    %v459 = vstv %s458
    %v460 = vmul.f32 %v39, %v459
    %s461 = sld [smem:[#allocation6 + $0xa6]]
    %v462 = vstv %s461
    %v463 = vadd.f32 %v460, %v462
    %v464 = vmax.f32 %v463, 0.0
    %s465 = sld [smem:[#allocation6 + $0x126]]
    %v466 = vstv %s465
    %v467 = vmul.f32 %v464, %v466
    %v468 = vadd.f32 %v457, %v467
    %s469 = sld [smem:[#allocation6 + $0x27]]
    %v470 = vstv %s469
    %v471 = vmul.f32 %v39, %v470
    %s472 = sld [smem:[#allocation6 + $0xa7]]
    %v473 = vstv %s472
    %v474 = vadd.f32 %v471, %v473
    %v475 = vmax.f32 %v474, 0.0
    %s476 = sld [smem:[#allocation6 + $0x127]]
    %v477 = vstv %s476
    %v478 = vmul.f32 %v475, %v477
    %v479 = vadd.f32 %v468, %v478
    %s480 = sld [smem:[#allocation6 + $0x28]]
    %v481 = vstv %s480
    %v482 = vmul.f32 %v39, %v481
    %s483 = sld [smem:[#allocation6 + $0xa8]]
    %v484 = vstv %s483
    %v485 = vadd.f32 %v482, %v484
    %v486 = vmax.f32 %v485, 0.0
    %s487 = sld [smem:[#allocation6 + $0x128]]
    %v488 = vstv %s487
    %v489 = vmul.f32 %v486, %v488
    %v490 = vadd.f32 %v479, %v489
    %s491 = sld [smem:[#allocation6 + $0x29]]
    %v492 = vstv %s491
    %v493 = vmul.f32 %v39, %v492
    %s494 = sld [smem:[#allocation6 + $0xa9]]
    %v495 = vstv %s494
    %v496 = vadd.f32 %v493, %v495
    %v497 = vmax.f32 %v496, 0.0
    %s498 = sld [smem:[#allocation6 + $0x129]]
    %v499 = vstv %s498
    %v500 = vmul.f32 %v497, %v499
    %v501 = vadd.f32 %v490, %v500
    %s502 = sld [smem:[#allocation6 + $0x2a]]
    %v503 = vstv %s502
    %v504 = vmul.f32 %v39, %v503
    %s505 = sld [smem:[#allocation6 + $0xaa]]
    %v506 = vstv %s505
    %v507 = vadd.f32 %v504, %v506
    %v508 = vmax.f32 %v507, 0.0
    %s509 = sld [smem:[#allocation6 + $0x12a]]
    %v510 = vstv %s509
    %v511 = vmul.f32 %v508, %v510
    %v512 = vadd.f32 %v501, %v511
    %s513 = sld [smem:[#allocation6 + $0x2b]]
    %v514 = vstv %s513
    %v515 = vmul.f32 %v39, %v514
    %s516 = sld [smem:[#allocation6 + $0xab]]
    %v517 = vstv %s516
    %v518 = vadd.f32 %v515, %v517
    %v519 = vmax.f32 %v518, 0.0
    %s520 = sld [smem:[#allocation6 + $0x12b]]
    %v521 = vstv %s520
    %v522 = vmul.f32 %v519, %v521
    %v523 = vadd.f32 %v512, %v522
    %s524 = sld [smem:[#allocation6 + $0x2c]]
    %v525 = vstv %s524
    %v526 = vmul.f32 %v39, %v525
    %s527 = sld [smem:[#allocation6 + $0xac]]
    %v528 = vstv %s527
    %v529 = vadd.f32 %v526, %v528
    %v530 = vmax.f32 %v529, 0.0
    %s531 = sld [smem:[#allocation6 + $0x12c]]
    %v532 = vstv %s531
    %v533 = vmul.f32 %v530, %v532
    %v534 = vadd.f32 %v523, %v533
    %s535 = sld [smem:[#allocation6 + $0x2d]]
    %v536 = vstv %s535
    %v537 = vmul.f32 %v39, %v536
    %s538 = sld [smem:[#allocation6 + $0xad]]
    %v539 = vstv %s538
    %v540 = vadd.f32 %v537, %v539
    %v541 = vmax.f32 %v540, 0.0
    %s542 = sld [smem:[#allocation6 + $0x12d]]
    %v543 = vstv %s542
    %v544 = vmul.f32 %v541, %v543
    %v545 = vadd.f32 %v534, %v544
    %s546 = sld [smem:[#allocation6 + $0x2e]]
    %v547 = vstv %s546
    %v548 = vmul.f32 %v39, %v547
    %s549 = sld [smem:[#allocation6 + $0xae]]
    %v550 = vstv %s549
    %v551 = vadd.f32 %v548, %v550
    %v552 = vmax.f32 %v551, 0.0
    %s553 = sld [smem:[#allocation6 + $0x12e]]
    %v554 = vstv %s553
    %v555 = vmul.f32 %v552, %v554
    %v556 = vadd.f32 %v545, %v555
    %s557 = sld [smem:[#allocation6 + $0x2f]]
    %v558 = vstv %s557
    %v559 = vmul.f32 %v39, %v558
    %s560 = sld [smem:[#allocation6 + $0xaf]]
    %v561 = vstv %s560
    %v562 = vadd.f32 %v559, %v561
    %v563 = vmax.f32 %v562, 0.0
    %s564 = sld [smem:[#allocation6 + $0x12f]]
    %v565 = vstv %s564
    %v566 = vmul.f32 %v563, %v565
    %v567 = vadd.f32 %v556, %v566
    %s568 = sld [smem:[#allocation6 + $0x30]]
    %v569 = vstv %s568
    %v570 = vmul.f32 %v39, %v569
    %s571 = sld [smem:[#allocation6 + $0xb0]]
    %v572 = vstv %s571
    %v573 = vadd.f32 %v570, %v572
    %v574 = vmax.f32 %v573, 0.0
    %s575 = sld [smem:[#allocation6 + $0x130]]
    %v576 = vstv %s575
    %v577 = vmul.f32 %v574, %v576
    %v578 = vadd.f32 %v567, %v577
    %s579 = sld [smem:[#allocation6 + $0x31]]
    %v580 = vstv %s579
    %v581 = vmul.f32 %v39, %v580
    %s582 = sld [smem:[#allocation6 + $0xb1]]
    %v583 = vstv %s582
    %v584 = vadd.f32 %v581, %v583
    %v585 = vmax.f32 %v584, 0.0
    %s586 = sld [smem:[#allocation6 + $0x131]]
    %v587 = vstv %s586
    %v588 = vmul.f32 %v585, %v587
    %v589 = vadd.f32 %v578, %v588
    %s590 = sld [smem:[#allocation6 + $0x32]]
    %v591 = vstv %s590
    %v592 = vmul.f32 %v39, %v591
    %s593 = sld [smem:[#allocation6 + $0xb2]]
    %v594 = vstv %s593
    %v595 = vadd.f32 %v592, %v594
    %v596 = vmax.f32 %v595, 0.0
    %s597 = sld [smem:[#allocation6 + $0x132]]
    %v598 = vstv %s597
    %v599 = vmul.f32 %v596, %v598
    %v600 = vadd.f32 %v589, %v599
    %s601 = sld [smem:[#allocation6 + $0x33]]
    %v602 = vstv %s601
    %v603 = vmul.f32 %v39, %v602
    %s604 = sld [smem:[#allocation6 + $0xb3]]
    %v605 = vstv %s604
    %v606 = vadd.f32 %v603, %v605
    %v607 = vmax.f32 %v606, 0.0
    %s608 = sld [smem:[#allocation6 + $0x133]]
    %v609 = vstv %s608
    %v610 = vmul.f32 %v607, %v609
    %v611 = vadd.f32 %v600, %v610
    %s612 = sld [smem:[#allocation6 + $0x34]]
    %v613 = vstv %s612
    %v614 = vmul.f32 %v39, %v613
    %s615 = sld [smem:[#allocation6 + $0xb4]]
    %v616 = vstv %s615
    %v617 = vadd.f32 %v614, %v616
    %v618 = vmax.f32 %v617, 0.0
    %s619 = sld [smem:[#allocation6 + $0x134]]
    %v620 = vstv %s619
    %v621 = vmul.f32 %v618, %v620
    %v622 = vadd.f32 %v611, %v621
    %s623 = sld [smem:[#allocation6 + $0x35]]
    %v624 = vstv %s623
    %v625 = vmul.f32 %v39, %v624
    %s626 = sld [smem:[#allocation6 + $0xb5]]
    %v627 = vstv %s626
    %v628 = vadd.f32 %v625, %v627
    %v629 = vmax.f32 %v628, 0.0
    %s630 = sld [smem:[#allocation6 + $0x135]]
    %v631 = vstv %s630
    %v632 = vmul.f32 %v629, %v631
    %v633 = vadd.f32 %v622, %v632
    %s634 = sld [smem:[#allocation6 + $0x36]]
    %v635 = vstv %s634
    %v636 = vmul.f32 %v39, %v635
    %s637 = sld [smem:[#allocation6 + $0xb6]]
    %v638 = vstv %s637
    %v639 = vadd.f32 %v636, %v638
    %v640 = vmax.f32 %v639, 0.0
    %s641 = sld [smem:[#allocation6 + $0x136]]
    %v642 = vstv %s641
    %v643 = vmul.f32 %v640, %v642
    %v644 = vadd.f32 %v633, %v643
    %s645 = sld [smem:[#allocation6 + $0x37]]
    %v646 = vstv %s645
    %v647 = vmul.f32 %v39, %v646
    %s648 = sld [smem:[#allocation6 + $0xb7]]
    %v649 = vstv %s648
    %v650 = vadd.f32 %v647, %v649
    %v651 = vmax.f32 %v650, 0.0
    %s652 = sld [smem:[#allocation6 + $0x137]]
    %v653 = vstv %s652
    %v654 = vmul.f32 %v651, %v653
    %v655 = vadd.f32 %v644, %v654
    %s656 = sld [smem:[#allocation6 + $0x38]]
    %v657 = vstv %s656
    %v658 = vmul.f32 %v39, %v657
    %s659 = sld [smem:[#allocation6 + $0xb8]]
    %v660 = vstv %s659
    %v661 = vadd.f32 %v658, %v660
    %v662 = vmax.f32 %v661, 0.0
    %s663 = sld [smem:[#allocation6 + $0x138]]
    %v664 = vstv %s663
    %v665 = vmul.f32 %v662, %v664
    %v666 = vadd.f32 %v655, %v665
    %s667 = sld [smem:[#allocation6 + $0x39]]
    %v668 = vstv %s667
    %v669 = vmul.f32 %v39, %v668
    %s670 = sld [smem:[#allocation6 + $0xb9]]
    %v671 = vstv %s670
    %v672 = vadd.f32 %v669, %v671
    %v673 = vmax.f32 %v672, 0.0
    %s674 = sld [smem:[#allocation6 + $0x139]]
    %v675 = vstv %s674
    %v676 = vmul.f32 %v673, %v675
    %v677 = vadd.f32 %v666, %v676
    %s678 = sld [smem:[#allocation6 + $0x3a]]
    %v679 = vstv %s678
    %v680 = vmul.f32 %v39, %v679
    %s681 = sld [smem:[#allocation6 + $0xba]]
    %v682 = vstv %s681
    %v683 = vadd.f32 %v680, %v682
    %v684 = vmax.f32 %v683, 0.0
    %s685 = sld [smem:[#allocation6 + $0x13a]]
    %v686 = vstv %s685
    %v687 = vmul.f32 %v684, %v686
    %v688 = vadd.f32 %v677, %v687
    %s689 = sld [smem:[#allocation6 + $0x3b]]
    %v690 = vstv %s689
    %v691 = vmul.f32 %v39, %v690
    %s692 = sld [smem:[#allocation6 + $0xbb]]
    %v693 = vstv %s692
    %v694 = vadd.f32 %v691, %v693
    %v695 = vmax.f32 %v694, 0.0
    %s696 = sld [smem:[#allocation6 + $0x13b]]
    %v697 = vstv %s696
    %v698 = vmul.f32 %v695, %v697
    %v699 = vadd.f32 %v688, %v698
    %s700 = sld [smem:[#allocation6 + $0x3c]]
    %v701 = vstv %s700
    %v702 = vmul.f32 %v39, %v701
    %s703 = sld [smem:[#allocation6 + $0xbc]]
    %v704 = vstv %s703
    %v705 = vadd.f32 %v702, %v704
    %v706 = vmax.f32 %v705, 0.0
    %s707 = sld [smem:[#allocation6 + $0x13c]]
    %v708 = vstv %s707
    %v709 = vmul.f32 %v706, %v708
    %v710 = vadd.f32 %v699, %v709
    %s711 = sld [smem:[#allocation6 + $0x3d]]
    %v712 = vstv %s711
    %v713 = vmul.f32 %v39, %v712
    %s714 = sld [smem:[#allocation6 + $0xbd]]
    %v715 = vstv %s714
    %v716 = vadd.f32 %v713, %v715
    %v717 = vmax.f32 %v716, 0.0
    %s718 = sld [smem:[#allocation6 + $0x13d]]
    %v719 = vstv %s718
    %v720 = vmul.f32 %v717, %v719
    %v721 = vadd.f32 %v710, %v720
    %s722 = sld [smem:[#allocation6 + $0x3e]]
    %v723 = vstv %s722
    %v724 = vmul.f32 %v39, %v723
    %s725 = sld [smem:[#allocation6 + $0xbe]]
    %v726 = vstv %s725
    %v727 = vadd.f32 %v724, %v726
    %v728 = vmax.f32 %v727, 0.0
    %s729 = sld [smem:[#allocation6 + $0x13e]]
    %v730 = vstv %s729
    %v731 = vmul.f32 %v728, %v730
    %v732 = vadd.f32 %v721, %v731
    %s733 = sld [smem:[#allocation6 + $0x3f]]
    %v734 = vstv %s733
    %v735 = vmul.f32 %v39, %v734
    %s736 = sld [smem:[#allocation6 + $0xbf]]
    %v737 = vstv %s736
    %v738 = vadd.f32 %v735, %v737
    %v739 = vmax.f32 %v738, 0.0
    %s740 = sld [smem:[#allocation6 + $0x13f]]
    %v741 = vstv %s740
    %v742 = vmul.f32 %v739, %v741
    %v743 = vadd.f32 %v732, %v742
    %s744 = sld [smem:[#allocation6 + $0x180]]
    %v745 = vstv %s744
    %v746 = vadd.f32 %v743, %v745
    %v747 = vmax.f32 %v746, 0.0
    %748 = vst [vmem:[#allocation7] sm:$0x1] %v747
    // Predicated region
    $region18: #{tpu_custom_call.1} parent=1 // pred_check
      _
    $region19: #{tpu_custom_call.1} parent=1 // pred_check_branch
      %750 = sbr.rel (0) target = $region21
    $region20: #{tpu_custom_call.1} parent=1 // pred_region
      %752 = vsyncadd [#allocation4], 0
      %s754 = sshll.u32 [#allocation7], 4
      %s755 = int_to_ptr.vmem [resolvable:$true] %s754
      %s756 = sshll.u32 %s2, 4
      %s757 = int_to_ptr.hbm [resolvable:$true] %s756
      %759 = dma.vmem_to_hbm [thread:$0]  %s755, 16, %s757, [#allocation4]
    $region21: #{tpu_custom_call.1} parent=1 // pred_fallthru
      _
    // Predicated region
    $region22: #{tpu_custom_call.1} parent=1 // pred_check
      _
    $region23: #{tpu_custom_call.1} parent=1 // pred_check_branch
      %761 = sbr.rel (0) target = $region25
    $region24: #{tpu_custom_call.1} parent=1 // pred_region
      %763 = dma.done [#allocation4], 16
    $region25: #{tpu_custom_call.1} parent=1 // pred_fallthru
      _
    %764 = vsyncpa [#allocation3], 1
    %765 = vsyncpa [#allocation4], 1
    %766 = vsyncpa [#allocation5], 1

</llo_original>
